<compile_context>
chip_gen: v7x
topology: tpu7x:2x2x1
jax: 0.10.0
libtpu: 0.0.40
codegen_flags: <defaults>
</compile_context>

<pallas_src>
import functools

import jax
import jax.numpy as jnp
from jax import lax
from jax.experimental import pallas as pl
from jax.experimental.pallas import tpu as pltpu

HIDDEN = 64
BATCH_BLOCK = 8          # sublane tile; batch is padded to a multiple of this


def _instnorm_lastdim(v, eps=1e-5):
    # InstanceNorm1d (affine=False): per-row normalization over the last axis,
    # biased variance, eps=1e-5.  Single-pass variance (perf feedback).
    m = jnp.mean(v, axis=-1, keepdims=True)
    ex2 = jnp.mean(v * v, axis=-1, keepdims=True)
    var = jnp.maximum(ex2 - m * m, 0.0)
    return (v - m) * lax.rsqrt(var + eps)


def _sigmoid(x):
    # Exact sigmoid via tanh: single EUP push per gate slab.
    return 0.5 * (jnp.tanh(0.5 * x) + 1.0)


def gru_classifier_kernel(
    x_ref,                       # (T_CHUNK, BB, D_in)  time-major chunk
    w1_ref, b1_ref,              # (D_in, 128) [cdt], (1, 128) f32
    w2_ref, b2_ref,              # (128, 64)   [cdt], (1, 64)  f32
    wih_ref, bih_ref,            # (64, 192)   [cdt], (1, 192) f32 (b_hh r|z folded in)
    whh_ref, bhhn_ref,           # (64, 192) f32, (1, 64) f32 (n-gate slice of b_hh)
    wha_ref, bha_ref,            # (64, 64), (1, 64)   fused head layer 1
    whb_ref, bhb_ref,            # (64, 8),  (1, 8)    block-diagonal head layer 2
    out_ref,                     # (BB, 8)   lane-padded fused head output
    gi_ref,                      # VMEM scratch (T_CHUNK*BB, 192) f32
    h_ref,                       # VMEM scratch (BB, 64) f32 hidden-state carry
    *, t_chunk, bb,
):
    H = HIDDEN
    t_idx = pl.program_id(1)

    # Reset the hidden-state carry at the first time chunk of each batch block.
    @pl.when(t_idx == 0)
    def _():
        h_ref[...] = jnp.zeros_like(h_ref)

    # ---- Phase 1 (batched, MXU): MLP + GRU input projection for this chunk --
    cdt = w1_ref.dtype                               # bf16 (or f32) matmul dtype
    rows = t_chunk * bb
    x2 = x_ref[...].reshape(rows, x_ref.shape[-1]).astype(cdt)
    h1 = jnp.dot(x2, w1_ref[...], preferred_element_type=jnp.float32) + b1_ref[...]
    h1 = _instnorm_lastdim(jnp.maximum(h1, 0.0))
    h2 = jnp.dot(h1.astype(cdt), w2_ref[...],
                 preferred_element_type=jnp.float32) + b2_ref[...]
    h2 = _instnorm_lastdim(jnp.maximum(h2, 0.0))
    # Stage gi in VMEM so the serial loop below does not hold the slab in vregs.
    gi_ref[...] = jnp.dot(h2.astype(cdt), wih_ref[...],
                          preferred_element_type=jnp.float32) + bih_ref[...]

    # ---- Phase 2 (serial): GRU recurrence over this time chunk --------------
    whh = whh_ref[...]
    bhh_n = bhhn_ref[...]

    # TODO(synk): for long sequences, hold W_hh in the MXU staging registers
    # across the loop via pltpu.matmul_push_rhs/matmul_acc_lhs/matmul_pop.
    def step(t, h):
        start = pl.multiple_of(t * bb, bb)
        gi = gi_ref[pl.ds(start, bb), :]                         # (BB, 192)
        gh = jnp.dot(h, whh, preferred_element_type=jnp.float32)
        rz = _sigmoid(gi[:, :2 * H] + gh[:, :2 * H])             # r|z in one slab
        r = rz[:, :H]
        z = rz[:, H:]
        n = jnp.tanh(gi[:, 2 * H:] + r * (gh[:, 2 * H:] + bhh_n))
        return n + z * (h - n)                                   # == (1-z)*n + z*h

    h = lax.fori_loop(0, t_chunk, step, h_ref[...], unroll=min(t_chunk, 8))
    h_ref[...] = h

    # ---- Phase 3: fused classification heads at the last time chunk ---------
    @pl.when(t_idx == pl.num_programs(1) - 1)
    def _():
        a = jnp.maximum(
            jnp.dot(h, wha_ref[...], preferred_element_type=jnp.float32)
            + bha_ref[...], 0.0)                                 # (BB, 64)
        a1 = _instnorm_lastdim(a[:, :H // 2])
        a2 = _instnorm_lastdim(a[:, H // 2:])
        an = jnp.concatenate([a1, a2], axis=-1)
        out_ref[...] = (jnp.dot(an, whb_ref[...],
                                preferred_element_type=jnp.float32)
                        + bhb_ref[...])


def make_params(input_size, key):
    """Deterministic synthetic parameters (shapes follow the nn.Module)."""
    H = HIDDEN
    ks = jax.random.split(key, 16)
    f32 = jnp.float32

    def w(k, shape, scale):
        return (scale * jax.random.normal(k, shape)).astype(f32)

    return [
        w(ks[0], (input_size, 128), 0.2),   # mlp Linear 1 weight (transposed)
        w(ks[1], (1, 128), 0.1),            # mlp Linear 1 bias
        w(ks[2], (128, H), 0.1),            # mlp Linear 2 weight
        w(ks[3], (1, H), 0.1),              # mlp Linear 2 bias
        w(ks[4], (H, 3 * H), 0.1),          # GRU W_ih^T  (gate order r|z|n)
        w(ks[5], (H, 3 * H), 0.1),          # GRU W_hh^T
        w(ks[6], (1, 3 * H), 0.1),          # GRU b_ih
        w(ks[7], (1, 3 * H), 0.1),          # GRU b_hh
        w(ks[8], (H, H // 2), 0.2),         # fc_1 Linear 1 weight
        w(ks[9], (1, H // 2), 0.1),         # fc_1 Linear 1 bias
        w(ks[10], (H // 2, 5), 0.2),        # fc_1 Linear 2 weight
        w(ks[11], (1, 5), 0.1),             # fc_1 Linear 2 bias
        w(ks[12], (H, H // 2), 0.2),        # fc_2 Linear 1 weight
        w(ks[13], (1, H // 2), 0.1),        # fc_2 Linear 1 bias
        w(ks[14], (H // 2, 3), 0.2),        # fc_2 Linear 2 weight
        w(ks[15], (1, 3), 0.1),             # fc_2 Linear 2 bias
    ]


@functools.partial(jax.jit, static_argnames=("t_chunk", "use_bf16_phase1"))
def gru_classifier_forward(x, params, *, t_chunk=4, use_bf16_phase1=True):
    """x: (B, S, D_in) float32 -> (out1 (B,5), out2 (B,3))."""
    (w1, b1, w2, b2, wih, whh, bih, bhh,
     wf1a, bf1a, wf1b, bf1b, wf2a, bf2a, wf2b, bf2b) = params
    B, S, D = x.shape
    H = HIDDEN
    BB = BATCH_BLOCK
    if S % t_chunk != 0:
        t_chunk = S                           # fall back to a single chunk
    BP = ((B + BB - 1) // BB) * BB            # batch padded to sublane multiple
    NB = BP // BB
    NT = S // t_chunk
    rows = t_chunk * BB

    # Pad batch and go time-major: (S, BP, D_in); padded rows are discarded.
    xp = jnp.zeros((BP, S, D), x.dtype).at[:B].set(x)
    x3 = jnp.transpose(xp, (1, 0, 2))

    # Fold the r|z thirds of b_hh into b_ih at trace time; only the n-gate
    # slice of b_hh remains on the serial path.
    bih_f = bih + jnp.concatenate(
        [bhh[:, :2 * H], jnp.zeros_like(bhh[:, 2 * H:])], axis=1)
    bhh_n = bhh[:, 2 * H:]

    # Fuse the two classification heads: one (64,64) first-layer matmul plus a
    # block-diagonal (64,8) second layer emitting a single lane-padded output.
    wha = jnp.concatenate([wf1a, wf2a], axis=1)                  # (64, 64)
    bha = jnp.concatenate([bf1a, bf2a], axis=1)                  # (1, 64)
    whb = jnp.zeros((H, 8), jnp.float32)
    whb = whb.at[:H // 2, :5].set(wf1b).at[H // 2:, 5:].set(wf2b)
    bhb = jnp.concatenate([bf1b, bf2b], axis=1)                  # (1, 8)

    # bf16 operands for the batched Phase-1 matmuls; accumulation stays f32,
    # recurrence / gates / InstanceNorm stay f32 (v5e has no bf16 VPU/EUP).
    cdt = jnp.bfloat16 if use_bf16_phase1 else jnp.float32
    w1c, w2c, wihc = w1.astype(cdt), w2.astype(cdt), wih.astype(cdt)

    weights = (w1c, b1, w2c, b2, wihc, bih_f, whh, bhh_n, wha, bha, whb, bhb)

    def full_spec(a):
        # Full-array block with constant index map: fetched once, not re-DMA'd.
        nd = a.ndim
        return pl.BlockSpec(a.shape, lambda b, t: (0,) * nd)

    in_specs = [pl.BlockSpec((t_chunk, BB, D), lambda b, t: (t, b, 0))]
    in_specs += [full_spec(a) for a in weights]
    out_spec = pl.BlockSpec((BB, 8), lambda b, t: (b, 0))

    # Scoped-VMEM budget from the actual slabs (weights + double-buffered x
    # chunk + Phase-1 intermediates + scratch), with slack; clamp to v7x's
    # 64 MiB physical VMEM.
    weight_bytes = sum(int(a.size) * a.dtype.itemsize for a in weights)
    slab_bytes = rows * (D + 128 + 64 + 3 * H) * 4      # x2/h1/h2/gi values
    scratch_bytes = (rows * 3 * H + BB * H) * 4
    x_block_bytes = 2 * rows * D * x.dtype.itemsize     # double-buffered input
    vmem_limit = 2 * (weight_bytes + slab_bytes + scratch_bytes + x_block_bytes)
    vmem_limit = int(min(max(vmem_limit, 16 << 20), 64 << 20))

    kernel = functools.partial(gru_classifier_kernel, t_chunk=t_chunk, bb=BB)

    out_pad = pl.pallas_call(
        kernel,
        out_shape=jax.ShapeDtypeStruct((BP, 8), jnp.float32),
        grid=(NB, NT),
        in_specs=in_specs,
        out_specs=out_spec,
        scratch_shapes=[
            pltpu.VMEM((rows, 3 * H), jnp.float32),     # gi staging
            pltpu.VMEM((BB, H), jnp.float32),           # hidden-state carry
        ],
        compiler_params=pltpu.CompilerParams(
            # Batch blocks are independent -> "parallel" (2nd TC on v7x);
            # the time axis carries the recurrence -> "arbitrary".
            dimension_semantics=("parallel", "arbitrary"),
            vmem_limit_bytes=vmem_limit,
        ),
    )(x3, *weights)

    return out_pad[:B, :5], out_pad[:B, 5:8]


# --------------------------- pure-JAX reference ------------------------------
def _instnorm_ref(v, eps=1e-5):
    m = jnp.mean(v, axis=-1, keepdims=True)
    var = jnp.mean((v - m) ** 2, axis=-1, keepdims=True)
    return (v - m) * lax.rsqrt(var + eps)


def reference_forward(x, params):
    """Pure-JAX reference mirroring the PyTorch module (eval mode)."""
    (w1, b1, w2, b2, wih, whh, bih, bhh,
     wf1a, bf1a, wf1b, bf1b, wf2a, bf2a, wf2b, bf2b) = params
    H = HIDDEN

    h = _instnorm_ref(jax.nn.relu(x @ w1 + b1))
    h = _instnorm_ref(jax.nn.relu(h @ w2 + b2))             # (B, S, 64)

    B = x.shape[0]
    hst = jnp.zeros((B, H), jnp.float32)

    def step(hprev, xt):
        gi = xt @ wih + bih
        gh = hprev @ whh + bhh
        r = jax.nn.sigmoid(gi[:, :H] + gh[:, :H])
        z = jax.nn.sigmoid(gi[:, H:2 * H] + gh[:, H:2 * H])
        n = jnp.tanh(gi[:, 2 * H:] + r * gh[:, 2 * H:])
        return (1.0 - z) * n + z * hprev, None

    hst, _ = lax.scan(step, hst, jnp.transpose(h, (1, 0, 2)))

    a1 = _instnorm_ref(jax.nn.relu(hst @ wf1a + bf1a))
    o1 = a1 @ wf1b + bf1b
    a2 = _instnorm_ref(jax.nn.relu(hst @ wf2a + bf2a))
    o2 = a2 @ wf2b + bf2b
    return o1, o2


if __name__ == "__main__":
    B, S, D_in = 2, 8, 16
    key = jax.random.PRNGKey(0)
    kx, kp = jax.random.split(key)

    x = jax.random.normal(kx, (B, S, D_in), dtype=jnp.float32)
    params = make_params(D_in, kp)

    r1, r2 = reference_forward(x, params)

    # Exactness check: f32 Phase-1 path vs the pure-JAX reference.
    o1_f32, o2_f32 = jax.block_until_ready(
        gru_classifier_forward(x, params, t_chunk=4, use_bf16_phase1=False))
    assert o1_f32.shape == (B, 5) and o2_f32.shape == (B, 3)
    assert jnp.allclose(o1_f32, r1, atol=2e-4, rtol=2e-4), "fc_1 mismatch (f32)"
    assert jnp.allclose(o2_f32, r2, atol=2e-4, rtol=2e-4), "fc_2 mismatch (f32)"

    # Performance path: bf16 Phase-1 matmul operands (f32 accumulation/gates).
    o1, o2 = jax.block_until_ready(
        gru_classifier_forward(x, params, t_chunk=4, use_bf16_phase1=True))
    assert o1.shape == (B, 5) and o2.shape == (B, 3)
    assert jnp.allclose(o1, r1, atol=1e-1, rtol=1e-1), "fc_1 mismatch (bf16)"
    assert jnp.allclose(o2, r2, atol=1e-1, rtol=1e-1), "fc_2 mismatch (bf16)"

    print("KERNEL_OK")
</pallas_src>

<mosaic_0001>
module attributes {stable_mosaic.version = 11 : i64} {
  func.func @gru_classifier_kernel(%arg0: i32, %arg1: i32, %arg2: memref<4x8x16xf32, #tpu.memory_space<vmem>>, %arg3: memref<16x128xf32, #tpu.memory_space<vmem>>, %arg4: memref<1x128xf32, #tpu.memory_space<vmem>>, %arg5: memref<128x64xf32, #tpu.memory_space<vmem>>, %arg6: memref<1x64xf32, #tpu.memory_space<vmem>>, %arg7: memref<64x192xf32, #tpu.memory_space<vmem>>, %arg8: memref<1x192xf32, #tpu.memory_space<vmem>>, %arg9: memref<64x192xf32, #tpu.memory_space<vmem>>, %arg10: memref<1x64xf32, #tpu.memory_space<vmem>>, %arg11: memref<64x64xf32, #tpu.memory_space<vmem>>, %arg12: memref<1x64xf32, #tpu.memory_space<vmem>>, %arg13: memref<64x8xf32, #tpu.memory_space<vmem>>, %arg14: memref<1x8xf32, #tpu.memory_space<vmem>>, %arg15: memref<8x8xf32, #tpu.memory_space<vmem>>, %arg16: memref<32x192xf32, #tpu.memory_space<vmem>>, %arg17: memref<8x64xf32, #tpu.memory_space<vmem>>) attributes {dimension_semantics = [#tpu.dimension_semantics<parallel>, #tpu.dimension_semantics<arbitrary>], iteration_bounds = array<i64: 1, 2>, scalar_prefetch = 0 : i64, scratch_operands = 2 : i64, tpu.core_type = #tpu.core_type<tc>, window_params = [{transform_indices = @transform_0, window_bounds = array<i64: 4, 8, 16>}, {pipeline_mode = #tpu.pipeline_mode<synchronous>, transform_indices = @transform_1, window_bounds = array<i64: 16, 128>}, {pipeline_mode = #tpu.pipeline_mode<synchronous>, transform_indices = @transform_2, window_bounds = array<i64: 1, 128>}, {pipeline_mode = #tpu.pipeline_mode<synchronous>, transform_indices = @transform_3, window_bounds = array<i64: 128, 64>}, {pipeline_mode = #tpu.pipeline_mode<synchronous>, transform_indices = @transform_4, window_bounds = array<i64: 1, 64>}, {pipeline_mode = #tpu.pipeline_mode<synchronous>, transform_indices = @transform_5, window_bounds = array<i64: 64, 192>}, {pipeline_mode = #tpu.pipeline_mode<synchronous>, transform_indices = @transform_6, window_bounds = array<i64: 1, 192>}, {pipeline_mode = #tpu.pipeline_mode<synchronous>, transform_indices = @transform_7, window_bounds = array<i64: 64, 192>}, {pipeline_mode = #tpu.pipeline_mode<synchronous>, transform_indices = @transform_8, window_bounds = array<i64: 1, 64>}, {pipeline_mode = #tpu.pipeline_mode<synchronous>, transform_indices = @transform_9, window_bounds = array<i64: 64, 64>}, {pipeline_mode = #tpu.pipeline_mode<synchronous>, transform_indices = @transform_10, window_bounds = array<i64: 1, 64>}, {pipeline_mode = #tpu.pipeline_mode<synchronous>, transform_indices = @transform_11, window_bounds = array<i64: 64, 8>}, {pipeline_mode = #tpu.pipeline_mode<synchronous>, transform_indices = @transform_12, window_bounds = array<i64: 1, 8>}, {transform_indices = @transform_13, window_bounds = array<i64: 8, 8>}]} {
    %c0_i32 = arith.constant 0 : i32
    %0 = arith.cmpi eq, %arg1, %c0_i32 : i32
    %1 = arith.extui %0 : i1 to i32
    %c0_i32_0 = arith.constant 0 : i32
    %2 = arith.cmpi ne, %1, %c0_i32_0 : i32
    scf.if %2 {
      %cst_67 = arith.constant 0.000000e+00 : f32
      %180 = vector.broadcast %cst_67 : f32 to vector<8x64xf32>
      %c0_68 = arith.constant 0 : index
      %c0_69 = arith.constant 0 : index
      %181 = vector.load %arg17[%c0_68, %c0_69] : memref<8x64xf32, #tpu.memory_space<vmem>>, vector<8x64xf32>
      tpu.vector_store %arg17[%c0_68, %c0_69], %180 {strides = array<i32>} : memref<8x64xf32, #tpu.memory_space<vmem>>, vector<8x64xf32>,
    } else {
    }
    %c0 = arith.constant 0 : index
    %c0_1 = arith.constant 0 : index
    %c0_2 = arith.constant 0 : index
    %3 = vector.load %arg2[%c0, %c0_1, %c0_2] : memref<4x8x16xf32, #tpu.memory_space<vmem>>, vector<4x8x16xf32>
    %4 = vector.shape_cast %3 : vector<4x8x16xf32> to vector<32x16xf32>
    %c0_3 = arith.constant 0 : index
    %c0_4 = arith.constant 0 : index
    %5 = vector.load %arg3[%c0_3, %c0_4] : memref<16x128xf32, #tpu.memory_space<vmem>>, vector<16x128xf32>
    %cst = arith.constant dense<0.000000e+00> : vector<32x128xf32>
    %6 = tpu.matmul %4, %5, %cst {dimension_numbers = #tpu.dot_dimension_numbers<[1], [0], [0], [1], [0, 0, 1, 1], [], []>} : vector<32x16xf32>, vector<16x128xf32>, vector<32x128xf32> -> vector<32x128xf32>
    %c0_5 = arith.constant 0 : index
    %c0_6 = arith.constant 0 : index
    %7 = vector.load %arg4[%c0_5, %c0_6] : memref<1x128xf32, #tpu.memory_space<vmem>>, vector<1x128xf32>
    %8 = vector.broadcast %7 : vector<1x128xf32> to vector<32x128xf32>
    %9 = arith.addf %6, %8 : vector<32x128xf32>
    %cst_7 = arith.constant 0.000000e+00 : f32
    %10 = vector.broadcast %cst_7 : f32 to vector<32x128xf32>
    %11 = arith.maximumf %9, %10 : vector<32x128xf32>
    %cst_8 = arith.constant dense<0.000000e+00> : vector<32xf32>
    %12 = vector.multi_reduction <add>, %11, %cst_8 [1] : vector<32x128xf32> to vector<32xf32>
    %13 = vector.shape_cast %12 : vector<32xf32> to vector<32x1xf32>
    %cst_9 = arith.constant 1.280000e+02 : f32
    %14 = vector.broadcast %cst_9 : f32 to vector<32x1xf32>
    %15 = arith.divf %13, %14 : vector<32x1xf32>
    %16 = arith.mulf %11, %11 : vector<32x128xf32>
    %cst_10 = arith.constant dense<0.000000e+00> : vector<32xf32>
    %17 = vector.multi_reduction <add>, %16, %cst_10 [1] : vector<32x128xf32> to vector<32xf32>
    %18 = vector.shape_cast %17 : vector<32xf32> to vector<32x1xf32>
    %cst_11 = arith.constant 1.280000e+02 : f32
    %19 = vector.broadcast %cst_11 : f32 to vector<32x1xf32>
    %20 = arith.divf %18, %19 : vector<32x1xf32>
    %21 = arith.mulf %15, %15 : vector<32x1xf32>
    %22 = arith.subf %20, %21 : vector<32x1xf32>
    %cst_12 = arith.constant 0.000000e+00 : f32
    %23 = vector.broadcast %cst_12 : f32 to vector<32x1xf32>
    %24 = arith.maximumf %22, %23 : vector<32x1xf32>
    %25 = vector.broadcast %15 : vector<32x1xf32> to vector<32x128xf32>
    %26 = arith.subf %11, %25 : vector<32x128xf32>
    %cst_13 = arith.constant 9.99999974E-6 : f32
    %27 = vector.broadcast %cst_13 : f32 to vector<32x1xf32>
    %28 = arith.addf %24, %27 : vector<32x1xf32>
    %29 = math.rsqrt %28 : vector<32x1xf32>
    %30 = vector.broadcast %29 : vector<32x1xf32> to vector<32x128xf32>
    %31 = arith.mulf %26, %30 : vector<32x128xf32>
    %c0_14 = arith.constant 0 : index
    %c0_15 = arith.constant 0 : index
    %32 = vector.load %arg5[%c0_14, %c0_15] : memref<128x64xf32, #tpu.memory_space<vmem>>, vector<128x64xf32>
    %cst_16 = arith.constant dense<0.000000e+00> : vector<32x64xf32>
    %33 = tpu.matmul %31, %32, %cst_16 {dimension_numbers = #tpu.dot_dimension_numbers<[1], [0], [0], [1], [0, 0, 1, 1], [], []>} : vector<32x128xf32>, vector<128x64xf32>, vector<32x64xf32> -> vector<32x64xf32>
    %c0_17 = arith.constant 0 : index
    %c0_18 = arith.constant 0 : index
    %34 = vector.load %arg6[%c0_17, %c0_18] : memref<1x64xf32, #tpu.memory_space<vmem>>, vector<1x64xf32>
    %35 = vector.broadcast %34 : vector<1x64xf32> to vector<32x64xf32>
    %36 = arith.addf %33, %35 : vector<32x64xf32>
    %cst_19 = arith.constant 0.000000e+00 : f32
    %37 = vector.broadcast %cst_19 : f32 to vector<32x64xf32>
    %38 = arith.maximumf %36, %37 : vector<32x64xf32>
    %cst_20 = arith.constant dense<0.000000e+00> : vector<32xf32>
    %39 = vector.multi_reduction <add>, %38, %cst_20 [1] : vector<32x64xf32> to vector<32xf32>
    %40 = vector.shape_cast %39 : vector<32xf32> to vector<32x1xf32>
    %cst_21 = arith.constant 6.400000e+01 : f32
    %41 = vector.broadcast %cst_21 : f32 to vector<32x1xf32>
    %42 = arith.divf %40, %41 : vector<32x1xf32>
    %43 = arith.mulf %38, %38 : vector<32x64xf32>
    %cst_22 = arith.constant dense<0.000000e+00> : vector<32xf32>
    %44 = vector.multi_reduction <add>, %43, %cst_22 [1] : vector<32x64xf32> to vector<32xf32>
    %45 = vector.shape_cast %44 : vector<32xf32> to vector<32x1xf32>
    %cst_23 = arith.constant 6.400000e+01 : f32
    %46 = vector.broadcast %cst_23 : f32 to vector<32x1xf32>
    %47 = arith.divf %45, %46 : vector<32x1xf32>
    %48 = arith.mulf %42, %42 : vector<32x1xf32>
    %49 = arith.subf %47, %48 : vector<32x1xf32>
    %cst_24 = arith.constant 0.000000e+00 : f32
    %50 = vector.broadcast %cst_24 : f32 to vector<32x1xf32>
    %51 = arith.maximumf %49, %50 : vector<32x1xf32>
    %52 = vector.broadcast %42 : vector<32x1xf32> to vector<32x64xf32>
    %53 = arith.subf %38, %52 : vector<32x64xf32>
    %cst_25 = arith.constant 9.99999974E-6 : f32
    %54 = vector.broadcast %cst_25 : f32 to vector<32x1xf32>
    %55 = arith.addf %51, %54 : vector<32x1xf32>
    %56 = math.rsqrt %55 : vector<32x1xf32>
    %57 = vector.broadcast %56 : vector<32x1xf32> to vector<32x64xf32>
    %58 = arith.mulf %53, %57 : vector<32x64xf32>
    %c0_26 = arith.constant 0 : index
    %c0_27 = arith.constant 0 : index
    %59 = vector.load %arg7[%c0_26, %c0_27] : memref<64x192xf32, #tpu.memory_space<vmem>>, vector<64x192xf32>
    %cst_28 = arith.constant dense<0.000000e+00> : vector<32x192xf32>
    %60 = tpu.matmul %58, %59, %cst_28 {dimension_numbers = #tpu.dot_dimension_numbers<[1], [0], [0], [1], [0, 0, 1, 1], [], []>} : vector<32x64xf32>, vector<64x192xf32>, vector<32x192xf32> -> vector<32x192xf32>
    %c0_29 = arith.constant 0 : index
    %c0_30 = arith.constant 0 : index
    %61 = vector.load %arg8[%c0_29, %c0_30] : memref<1x192xf32, #tpu.memory_space<vmem>>, vector<1x192xf32>
    %62 = vector.broadcast %61 : vector<1x192xf32> to vector<32x192xf32>
    %63 = arith.addf %60, %62 : vector<32x192xf32>
    %c0_31 = arith.constant 0 : index
    %c0_32 = arith.constant 0 : index
    %64 = vector.load %arg16[%c0_31, %c0_32] : memref<32x192xf32, #tpu.memory_space<vmem>>, vector<32x192xf32>
    tpu.vector_store %arg16[%c0_31, %c0_32], %63 {strides = array<i32>} : memref<32x192xf32, #tpu.memory_space<vmem>>, vector<32x192xf32>,
    %c0_33 = arith.constant 0 : index
    %c0_34 = arith.constant 0 : index
    %65 = vector.load %arg9[%c0_33, %c0_34] : memref<64x192xf32, #tpu.memory_space<vmem>>, vector<64x192xf32>
    %c0_35 = arith.constant 0 : index
    %c0_36 = arith.constant 0 : index
    %66 = vector.load %arg10[%c0_35, %c0_36] : memref<1x64xf32, #tpu.memory_space<vmem>>, vector<1x64xf32>
    %c0_37 = arith.constant 0 : index
    %c0_38 = arith.constant 0 : index
    %67 = vector.load %arg17[%c0_37, %c0_38] : memref<8x64xf32, #tpu.memory_space<vmem>>, vector<8x64xf32>
    %c0_i32_39 = arith.constant 0 : i32
    %c8_i32 = arith.constant 8 : i32
    %68 = arith.muli %c0_i32_39, %c8_i32 : i32
    %69 = tpu.assume_multiple %68, 8 : i32
    %70 = arith.index_cast %69 : i32 to index
    %c0_40 = arith.constant 0 : index
    %71 = vector.load %arg16[%70, %c0_40] : memref<32x192xf32, #tpu.memory_space<vmem>>, vector<8x192xf32>
    %cst_41 = arith.constant dense<0.000000e+00> : vector<8x192xf32>
    %72 = tpu.matmul %67, %65, %cst_41 {dimension_numbers = #tpu.dot_dimension_numbers<[1], [0], [0], [1], [0, 0, 1, 1], [], []>} : vector<8x64xf32>, vector<64x192xf32>, vector<8x192xf32> -> vector<8x192xf32>
    %73 = vector.extract_strided_slice %71 {offsets = [0, 0], sizes = [8, 128], strides = [1, 1]} : vector<8x192xf32> to vector<8x128xf32>
    %74 = vector.extract_strided_slice %72 {offsets = [0, 0], sizes = [8, 128], strides = [1, 1]} : vector<8x192xf32> to vector<8x128xf32>
    %75 = arith.addf %73, %74 : vector<8x128xf32>
    %cst_42 = arith.constant 5.000000e-01 : f32
    %76 = vector.broadcast %cst_42 : f32 to vector<8x128xf32>
    %77 = arith.mulf %76, %75 : vector<8x128xf32>
    %78 = math.tanh %77 : vector<8x128xf32>
    %cst_43 = arith.constant 1.000000e+00 : f32
    %79 = vector.broadcast %cst_43 : f32 to vector<8x128xf32>
    %80 = arith.addf %78, %79 : vector<8x128xf32>
    %cst_44 = arith.constant 5.000000e-01 : f32
    %81 = vector.broadcast %cst_44 : f32 to vector<8x128xf32>
    %82 = arith.mulf %81, %80 : vector<8x128xf32>
    %83 = vector.extract_strided_slice %82 {offsets = [0, 0], sizes = [8, 64], strides = [1, 1]} : vector<8x128xf32> to vector<8x64xf32>
    %84 = vector.extract_strided_slice %82 {offsets = [0, 64], sizes = [8, 64], strides = [1, 1]} : vector<8x128xf32> to vector<8x64xf32>
    %85 = vector.extract_strided_slice %71 {offsets = [0, 128], sizes = [8, 64], strides = [1, 1]} : vector<8x192xf32> to vector<8x64xf32>
    %86 = vector.extract_strided_slice %72 {offsets = [0, 128], sizes = [8, 64], strides = [1, 1]} : vector<8x192xf32> to vector<8x64xf32>
    %87 = vector.broadcast %66 : vector<1x64xf32> to vector<8x64xf32>
    %88 = arith.addf %86, %87 : vector<8x64xf32>
    %89 = arith.mulf %83, %88 : vector<8x64xf32>
    %90 = arith.addf %85, %89 : vector<8x64xf32>
    %91 = math.tanh %90 : vector<8x64xf32>
    %92 = arith.subf %67, %91 : vector<8x64xf32>
    %93 = arith.mulf %84, %92 : vector<8x64xf32>
    %94 = arith.addf %91, %93 : vector<8x64xf32>
    %c1_i32 = arith.constant 1 : i32
    %c8_i32_45 = arith.constant 8 : i32
    %95 = arith.muli %c1_i32, %c8_i32_45 : i32
    %96 = tpu.assume_multiple %95, 8 : i32
    %97 = arith.index_cast %96 : i32 to index
    %c0_46 = arith.constant 0 : index
    %98 = vector.load %arg16[%97, %c0_46] : memref<32x192xf32, #tpu.memory_space<vmem>>, vector<8x192xf32>
    %cst_47 = arith.constant dense<0.000000e+00> : vector<8x192xf32>
    %99 = tpu.matmul %94, %65, %cst_47 {dimension_numbers = #tpu.dot_dimension_numbers<[1], [0], [0], [1], [0, 0, 1, 1], [], []>} : vector<8x64xf32>, vector<64x192xf32>, vector<8x192xf32> -> vector<8x192xf32>
    %100 = vector.extract_strided_slice %98 {offsets = [0, 0], sizes = [8, 128], strides = [1, 1]} : vector<8x192xf32> to vector<8x128xf32>
    %101 = vector.extract_strided_slice %99 {offsets = [0, 0], sizes = [8, 128], strides = [1, 1]} : vector<8x192xf32> to vector<8x128xf32>
    %102 = arith.addf %100, %101 : vector<8x128xf32>
    %cst_48 = arith.constant 5.000000e-01 : f32
    %103 = vector.broadcast %cst_48 : f32 to vector<8x128xf32>
    %104 = arith.mulf %103, %102 : vector<8x128xf32>
    %105 = math.tanh %104 : vector<8x128xf32>
    %cst_49 = arith.constant 1.000000e+00 : f32
    %106 = vector.broadcast %cst_49 : f32 to vector<8x128xf32>
    %107 = arith.addf %105, %106 : vector<8x128xf32>
    %cst_50 = arith.constant 5.000000e-01 : f32
    %108 = vector.broadcast %cst_50 : f32 to vector<8x128xf32>
    %109 = arith.mulf %108, %107 : vector<8x128xf32>
    %110 = vector.extract_strided_slice %109 {offsets = [0, 0], sizes = [8, 64], strides = [1, 1]} : vector<8x128xf32> to vector<8x64xf32>
    %111 = vector.extract_strided_slice %109 {offsets = [0, 64], sizes = [8, 64], strides = [1, 1]} : vector<8x128xf32> to vector<8x64xf32>
    %112 = vector.extract_strided_slice %98 {offsets = [0, 128], sizes = [8, 64], strides = [1, 1]} : vector<8x192xf32> to vector<8x64xf32>
    %113 = vector.extract_strided_slice %99 {offsets = [0, 128], sizes = [8, 64], strides = [1, 1]} : vector<8x192xf32> to vector<8x64xf32>
    %114 = vector.broadcast %66 : vector<1x64xf32> to vector<8x64xf32>
    %115 = arith.addf %113, %114 : vector<8x64xf32>
    %116 = arith.mulf %110, %115 : vector<8x64xf32>
    %117 = arith.addf %112, %116 : vector<8x64xf32>
    %118 = math.tanh %117 : vector<8x64xf32>
    %119 = arith.subf %94, %118 : vector<8x64xf32>
    %120 = arith.mulf %111, %119 : vector<8x64xf32>
    %121 = arith.addf %118, %120 : vector<8x64xf32>
    %c2_i32 = arith.constant 2 : i32
    %c8_i32_51 = arith.constant 8 : i32
    %122 = arith.muli %c2_i32, %c8_i32_51 : i32
    %123 = tpu.assume_multiple %122, 8 : i32
    %124 = arith.index_cast %123 : i32 to index
    %c0_52 = arith.constant 0 : index
    %125 = vector.load %arg16[%124, %c0_52] : memref<32x192xf32, #tpu.memory_space<vmem>>, vector<8x192xf32>
    %cst_53 = arith.constant dense<0.000000e+00> : vector<8x192xf32>
    %126 = tpu.matmul %121, %65, %cst_53 {dimension_numbers = #tpu.dot_dimension_numbers<[1], [0], [0], [1], [0, 0, 1, 1], [], []>} : vector<8x64xf32>, vector<64x192xf32>, vector<8x192xf32> -> vector<8x192xf32>
    %127 = vector.extract_strided_slice %125 {offsets = [0, 0], sizes = [8, 128], strides = [1, 1]} : vector<8x192xf32> to vector<8x128xf32>
    %128 = vector.extract_strided_slice %126 {offsets = [0, 0], sizes = [8, 128], strides = [1, 1]} : vector<8x192xf32> to vector<8x128xf32>
    %129 = arith.addf %127, %128 : vector<8x128xf32>
    %cst_54 = arith.constant 5.000000e-01 : f32
    %130 = vector.broadcast %cst_54 : f32 to vector<8x128xf32>
    %131 = arith.mulf %130, %129 : vector<8x128xf32>
    %132 = math.tanh %131 : vector<8x128xf32>
    %cst_55 = arith.constant 1.000000e+00 : f32
    %133 = vector.broadcast %cst_55 : f32 to vector<8x128xf32>
    %134 = arith.addf %132, %133 : vector<8x128xf32>
    %cst_56 = arith.constant 5.000000e-01 : f32
    %135 = vector.broadcast %cst_56 : f32 to vector<8x128xf32>
    %136 = arith.mulf %135, %134 : vector<8x128xf32>
    %137 = vector.extract_strided_slice %136 {offsets = [0, 0], sizes = [8, 64], strides = [1, 1]} : vector<8x128xf32> to vector<8x64xf32>
    %138 = vector.extract_strided_slice %136 {offsets = [0, 64], sizes = [8, 64], strides = [1, 1]} : vector<8x128xf32> to vector<8x64xf32>
    %139 = vector.extract_strided_slice %125 {offsets = [0, 128], sizes = [8, 64], strides = [1, 1]} : vector<8x192xf32> to vector<8x64xf32>
    %140 = vector.extract_strided_slice %126 {offsets = [0, 128], sizes = [8, 64], strides = [1, 1]} : vector<8x192xf32> to vector<8x64xf32>
    %141 = vector.broadcast %66 : vector<1x64xf32> to vector<8x64xf32>
    %142 = arith.addf %140, %141 : vector<8x64xf32>
    %143 = arith.mulf %137, %142 : vector<8x64xf32>
    %144 = arith.addf %139, %143 : vector<8x64xf32>
    %145 = math.tanh %144 : vector<8x64xf32>
    %146 = arith.subf %121, %145 : vector<8x64xf32>
    %147 = arith.mulf %138, %146 : vector<8x64xf32>
    %148 = arith.addf %145, %147 : vector<8x64xf32>
    %c3_i32 = arith.constant 3 : i32
    %c8_i32_57 = arith.constant 8 : i32
    %149 = arith.muli %c3_i32, %c8_i32_57 : i32
    %150 = tpu.assume_multiple %149, 8 : i32
    %151 = arith.index_cast %150 : i32 to index
    %c0_58 = arith.constant 0 : index
    %152 = vector.load %arg16[%151, %c0_58] : memref<32x192xf32, #tpu.memory_space<vmem>>, vector<8x192xf32>
    %cst_59 = arith.constant dense<0.000000e+00> : vector<8x192xf32>
    %153 = tpu.matmul %148, %65, %cst_59 {dimension_numbers = #tpu.dot_dimension_numbers<[1], [0], [0], [1], [0, 0, 1, 1], [], []>} : vector<8x64xf32>, vector<64x192xf32>, vector<8x192xf32> -> vector<8x192xf32>
    %154 = vector.extract_strided_slice %152 {offsets = [0, 0], sizes = [8, 128], strides = [1, 1]} : vector<8x192xf32> to vector<8x128xf32>
    %155 = vector.extract_strided_slice %153 {offsets = [0, 0], sizes = [8, 128], strides = [1, 1]} : vector<8x192xf32> to vector<8x128xf32>
    %156 = arith.addf %154, %155 : vector<8x128xf32>
    %cst_60 = arith.constant 5.000000e-01 : f32
    %157 = vector.broadcast %cst_60 : f32 to vector<8x128xf32>
    %158 = arith.mulf %157, %156 : vector<8x128xf32>
    %159 = math.tanh %158 : vector<8x128xf32>
    %cst_61 = arith.constant 1.000000e+00 : f32
    %160 = vector.broadcast %cst_61 : f32 to vector<8x128xf32>
    %161 = arith.addf %159, %160 : vector<8x128xf32>
    %cst_62 = arith.constant 5.000000e-01 : f32
    %162 = vector.broadcast %cst_62 : f32 to vector<8x128xf32>
    %163 = arith.mulf %162, %161 : vector<8x128xf32>
    %164 = vector.extract_strided_slice %163 {offsets = [0, 0], sizes = [8, 64], strides = [1, 1]} : vector<8x128xf32> to vector<8x64xf32>
    %165 = vector.extract_strided_slice %163 {offsets = [0, 64], sizes = [8, 64], strides = [1, 1]} : vector<8x128xf32> to vector<8x64xf32>
    %166 = vector.extract_strided_slice %152 {offsets = [0, 128], sizes = [8, 64], strides = [1, 1]} : vector<8x192xf32> to vector<8x64xf32>
    %167 = vector.extract_strided_slice %153 {offsets = [0, 128], sizes = [8, 64], strides = [1, 1]} : vector<8x192xf32> to vector<8x64xf32>
    %168 = vector.broadcast %66 : vector<1x64xf32> to vector<8x64xf32>
    %169 = arith.addf %167, %168 : vector<8x64xf32>
    %170 = arith.mulf %164, %169 : vector<8x64xf32>
    %171 = arith.addf %166, %170 : vector<8x64xf32>
    %172 = math.tanh %171 : vector<8x64xf32>
    %173 = arith.subf %148, %172 : vector<8x64xf32>
    %174 = arith.mulf %165, %173 : vector<8x64xf32>
    %175 = arith.addf %172, %174 : vector<8x64xf32>
    %c4_i32 = arith.constant 4 : i32
    %c0_63 = arith.constant 0 : index
    %c0_64 = arith.constant 0 : index
    %176 = vector.load %arg17[%c0_63, %c0_64] : memref<8x64xf32, #tpu.memory_space<vmem>>, vector<8x64xf32>
    tpu.vector_store %arg17[%c0_63, %c0_64], %175 {strides = array<i32>} : memref<8x64xf32, #tpu.memory_space<vmem>>, vector<8x64xf32>,
    %c1_i32_65 = arith.constant 1 : i32
    %177 = arith.cmpi eq, %arg1, %c1_i32_65 : i32
    %178 = arith.extui %177 : i1 to i32
    %c0_i32_66 = arith.constant 0 : i32
    %179 = arith.cmpi ne, %178, %c0_i32_66 : i32
    scf.if %179 {
      %c0_67 = arith.constant 0 : index
      %c0_68 = arith.constant 0 : index
      %180 = vector.load %arg11[%c0_67, %c0_68] : memref<64x64xf32, #tpu.memory_space<vmem>>, vector<64x64xf32>
      %cst_69 = arith.constant dense<0.000000e+00> : vector<8x64xf32>
      %181 = tpu.matmul %175, %180, %cst_69 {dimension_numbers = #tpu.dot_dimension_numbers<[1], [0], [0], [1], [0, 0, 1, 1], [], []>} : vector<8x64xf32>, vector<64x64xf32>, vector<8x64xf32> -> vector<8x64xf32>
      %c0_70 = arith.constant 0 : index
      %c0_71 = arith.constant 0 : index
      %182 = vector.load %arg12[%c0_70, %c0_71] : memref<1x64xf32, #tpu.memory_space<vmem>>, vector<1x64xf32>
      %183 = vector.broadcast %182 : vector<1x64xf32> to vector<8x64xf32>
      %184 = arith.addf %181, %183 : vector<8x64xf32>
      %cst_72 = arith.constant 0.000000e+00 : f32
      %185 = vector.broadcast %cst_72 : f32 to vector<8x64xf32>
      %186 = arith.maximumf %184, %185 : vector<8x64xf32>
      %187 = vector.extract_strided_slice %186 {offsets = [0, 0], sizes = [8, 32], strides = [1, 1]} : vector<8x64xf32> to vector<8x32xf32>
      %cst_73 = arith.constant dense<0.000000e+00> : vector<8xf32>
      %188 = vector.multi_reduction <add>, %187, %cst_73 [1] : vector<8x32xf32> to vector<8xf32>
      %189 = vector.shape_cast %188 : vector<8xf32> to vector<8x1xf32>
      %cst_74 = arith.constant 3.200000e+01 : f32
      %190 = vector.broadcast %cst_74 : f32 to vector<8x1xf32>
      %191 = arith.divf %189, %190 : vector<8x1xf32>
      %192 = arith.mulf %187, %187 : vector<8x32xf32>
      %cst_75 = arith.constant dense<0.000000e+00> : vector<8xf32>
      %193 = vector.multi_reduction <add>, %192, %cst_75 [1] : vector<8x32xf32> to vector<8xf32>
      %194 = vector.shape_cast %193 : vector<8xf32> to vector<8x1xf32>
      %cst_76 = arith.constant 3.200000e+01 : f32
      %195 = vector.broadcast %cst_76 : f32 to vector<8x1xf32>
      %196 = arith.divf %194, %195 : vector<8x1xf32>
      %197 = arith.mulf %191, %191 : vector<8x1xf32>
      %198 = arith.subf %196, %197 : vector<8x1xf32>
      %cst_77 = arith.constant 0.000000e+00 : f32
      %199 = vector.broadcast %cst_77 : f32 to vector<8x1xf32>
      %200 = arith.maximumf %198, %199 : vector<8x1xf32>
      %201 = vector.broadcast %191 : vector<8x1xf32> to vector<8x32xf32>
      %202 = arith.subf %187, %201 : vector<8x32xf32>
      %cst_78 = arith.constant 9.99999974E-6 : f32
      %203 = vector.broadcast %cst_78 : f32 to vector<8x1xf32>
      %204 = arith.addf %200, %203 : vector<8x1xf32>
      %205 = math.rsqrt %204 : vector<8x1xf32>
      %206 = vector.broadcast %205 : vector<8x1xf32> to vector<8x32xf32>
      %207 = arith.mulf %202, %206 : vector<8x32xf32>
      %208 = vector.extract_strided_slice %186 {offsets = [0, 32], sizes = [8, 32], strides = [1, 1]} : vector<8x64xf32> to vector<8x32xf32>
      %cst_79 = arith.constant dense<0.000000e+00> : vector<8xf32>
      %209 = vector.multi_reduction <add>, %208, %cst_79 [1] : vector<8x32xf32> to vector<8xf32>
      %210 = vector.shape_cast %209 : vector<8xf32> to vector<8x1xf32>
      %cst_80 = arith.constant 3.200000e+01 : f32
      %211 = vector.broadcast %cst_80 : f32 to vector<8x1xf32>
      %212 = arith.divf %210, %211 : vector<8x1xf32>
      %213 = arith.mulf %208, %208 : vector<8x32xf32>
      %cst_81 = arith.constant dense<0.000000e+00> : vector<8xf32>
      %214 = vector.multi_reduction <add>, %213, %cst_81 [1] : vector<8x32xf32> to vector<8xf32>
      %215 = vector.shape_cast %214 : vector<8xf32> to vector<8x1xf32>
      %cst_82 = arith.constant 3.200000e+01 : f32
      %216 = vector.broadcast %cst_82 : f32 to vector<8x1xf32>
      %217 = arith.divf %215, %216 : vector<8x1xf32>
      %218 = arith.mulf %212, %212 : vector<8x1xf32>
      %219 = arith.subf %217, %218 : vector<8x1xf32>
      %cst_83 = arith.constant 0.000000e+00 : f32
      %220 = vector.broadcast %cst_83 : f32 to vector<8x1xf32>
      %221 = arith.maximumf %219, %220 : vector<8x1xf32>
      %222 = vector.broadcast %212 : vector<8x1xf32> to vector<8x32xf32>
      %223 = arith.subf %208, %222 : vector<8x32xf32>
      %cst_84 = arith.constant 9.99999974E-6 : f32
      %224 = vector.broadcast %cst_84 : f32 to vector<8x1xf32>
      %225 = arith.addf %221, %224 : vector<8x1xf32>
      %226 = math.rsqrt %225 : vector<8x1xf32>
      %227 = vector.broadcast %226 : vector<8x1xf32> to vector<8x32xf32>
      %228 = arith.mulf %223, %227 : vector<8x32xf32>
      %229 = tpu.concatenate %207, %228 in 1 : vector<8x32xf32>, vector<8x32xf32> -> vector<8x64xf32>
      %c0_85 = arith.constant 0 : index
      %c0_86 = arith.constant 0 : index
      %230 = vector.load %arg13[%c0_85, %c0_86] : memref<64x8xf32, #tpu.memory_space<vmem>>, vector<64x8xf32>
      %cst_87 = arith.constant dense<0.000000e+00> : vector<8x8xf32>
      %231 = tpu.matmul %229, %230, %cst_87 {dimension_numbers = #tpu.dot_dimension_numbers<[1], [0], [0], [1], [0, 0, 1, 1], [], []>} : vector<8x64xf32>, vector<64x8xf32>, vector<8x8xf32> -> vector<8x8xf32>
      %c0_88 = arith.constant 0 : index
      %c0_89 = arith.constant 0 : index
      %232 = vector.load %arg14[%c0_88, %c0_89] : memref<1x8xf32, #tpu.memory_space<vmem>>, vector<1x8xf32>
      %233 = vector.broadcast %232 : vector<1x8xf32> to vector<8x8xf32>
      %234 = arith.addf %231, %233 : vector<8x8xf32>
      %c0_90 = arith.constant 0 : index
      %c0_91 = arith.constant 0 : index
      %235 = vector.load %arg15[%c0_90, %c0_91] : memref<8x8xf32, #tpu.memory_space<vmem>>, vector<8x8xf32>
      tpu.vector_store %arg15[%c0_90, %c0_91], %234 {strides = array<i32>} : memref<8x8xf32, #tpu.memory_space<vmem>>, vector<8x8xf32>,
    } else {
    }
    return
  }
  func.func @transform_0(%arg0: i32, %arg1: i32) -> (i32, i32, i32) {
    %c0_i32 = arith.constant 0 : i32
    %c0_i32_0 = arith.constant 0 : i32
    return %arg1, %arg0, %c0_i32 : i32, i32, i32
  }
  func.func @transform_1(%arg0: i32, %arg1: i32) -> (i32, i32) {
    %c0_i32 = arith.constant 0 : i32
    %c0_i32_0 = arith.constant 0 : i32
    %c0_i32_1 = arith.constant 0 : i32
    return %c0_i32, %c0_i32_0 : i32, i32
  }
  func.func @transform_2(%arg0: i32, %arg1: i32) -> (i32, i32) {
    %c0_i32 = arith.constant 0 : i32
    %c0_i32_0 = arith.constant 0 : i32
    %c0_i32_1 = arith.constant 0 : i32
    return %c0_i32, %c0_i32_0 : i32, i32
  }
  func.func @transform_3(%arg0: i32, %arg1: i32) -> (i32, i32) {
    %c0_i32 = arith.constant 0 : i32
    %c0_i32_0 = arith.constant 0 : i32
    %c0_i32_1 = arith.constant 0 : i32
    return %c0_i32, %c0_i32_0 : i32, i32
  }
  func.func @transform_4(%arg0: i32, %arg1: i32) -> (i32, i32) {
    %c0_i32 = arith.constant 0 : i32
    %c0_i32_0 = arith.constant 0 : i32
    %c0_i32_1 = arith.constant 0 : i32
    return %c0_i32, %c0_i32_0 : i32, i32
  }
  func.func @transform_5(%arg0: i32, %arg1: i32) -> (i32, i32) {
    %c0_i32 = arith.constant 0 : i32
    %c0_i32_0 = arith.constant 0 : i32
    %c0_i32_1 = arith.constant 0 : i32
    return %c0_i32, %c0_i32_0 : i32, i32
  }
  func.func @transform_6(%arg0: i32, %arg1: i32) -> (i32, i32) {
    %c0_i32 = arith.constant 0 : i32
    %c0_i32_0 = arith.constant 0 : i32
    %c0_i32_1 = arith.constant 0 : i32
    return %c0_i32, %c0_i32_0 : i32, i32
  }
  func.func @transform_7(%arg0: i32, %arg1: i32) -> (i32, i32) {
    %c0_i32 = arith.constant 0 : i32
    %c0_i32_0 = arith.constant 0 : i32
    %c0_i32_1 = arith.constant 0 : i32
    return %c0_i32, %c0_i32_0 : i32, i32
  }
  func.func @transform_8(%arg0: i32, %arg1: i32) -> (i32, i32) {
    %c0_i32 = arith.constant 0 : i32
    %c0_i32_0 = arith.constant 0 : i32
    %c0_i32_1 = arith.constant 0 : i32
    return %c0_i32, %c0_i32_0 : i32, i32
  }
  func.func @transform_9(%arg0: i32, %arg1: i32) -> (i32, i32) {
    %c0_i32 = arith.constant 0 : i32
    %c0_i32_0 = arith.constant 0 : i32
    %c0_i32_1 = arith.constant 0 : i32
    return %c0_i32, %c0_i32_0 : i32, i32
  }
  func.func @transform_10(%arg0: i32, %arg1: i32) -> (i32, i32) {
    %c0_i32 = arith.constant 0 : i32
    %c0_i32_0 = arith.constant 0 : i32
    %c0_i32_1 = arith.constant 0 : i32
    return %c0_i32, %c0_i32_0 : i32, i32
  }
  func.func @transform_11(%arg0: i32, %arg1: i32) -> (i32, i32) {
    %c0_i32 = arith.constant 0 : i32
    %c0_i32_0 = arith.constant 0 : i32
    %c0_i32_1 = arith.constant 0 : i32
    return %c0_i32, %c0_i32_0 : i32, i32
  }
  func.func @transform_12(%arg0: i32, %arg1: i32) -> (i32, i32) {
    %c0_i32 = arith.constant 0 : i32
    %c0_i32_0 = arith.constant 0 : i32
    %c0_i32_1 = arith.constant 0 : i32
    return %c0_i32, %c0_i32_0 : i32, i32
  }
  func.func @transform_13(%arg0: i32, %arg1: i32) -> (i32, i32) {
    %c0_i32 = arith.constant 0 : i32
    %c0_i32_0 = arith.constant 0 : i32
    return %arg0, %c0_i32 : i32, i32
  }
}

</mosaic_0001>

<llo_original>
// kernel: gru_classifier_forward.1
$region0: #{gru_classifier_forward.1}
  #allocation0 [shape = 'u32[]', space=smem, size = 0x4, offset = 0x4, fixed_abs, tag = 'smem constant byte address 0x4 - core index']
  #allocation1 [shape = 'u32[144,128]{1,0:T(1,128)}', space=vmem, size = 0x12000, scoped, tag = 'internal scratch']
  #allocation2 [shape = 'f32[32,192]{1,0:T(8,128)}', space=vmem, size = 0x8000, scoped, tag = 'scratch operand']
  #allocation3 [shape = 'f32[8,64]{1,0:T(8,128)}', space=vmem, size = 0x1000, scoped, tag = 'scratch operand']
  %s0 = inlined_call_operand.vmem [shape: f32[8,8,16], index: 0, kind: input, shape index: {}]
  %s1 = inlined_call_operand.vmem [shape: f32[16,128], index: 1, kind: input, shape index: {}]
  %s2 = inlined_call_operand.vmem [shape: f32[1,128], index: 2, kind: input, shape index: {}]
  %s3 = inlined_call_operand.vmem [shape: f32[128,64], index: 3, kind: input, shape index: {}]
  %s4 = inlined_call_operand.vmem [shape: f32[1,64], index: 4, kind: input, shape index: {}]
  %s5 = inlined_call_operand.vmem [shape: f32[64,192], index: 5, kind: input, shape index: {}]
  %s6 = inlined_call_operand.vmem [shape: f32[1,192], index: 6, kind: input, shape index: {}]
  %s7 = inlined_call_operand.vmem [shape: f32[64,192], index: 7, kind: input, shape index: {}]
  %s8 = inlined_call_operand.vmem [shape: f32[1,64], index: 8, kind: input, shape index: {}]
  %s9 = inlined_call_operand.vmem [shape: f32[64,64], index: 9, kind: input, shape index: {}]
  %s10 = inlined_call_operand.vmem [shape: f32[1,64], index: 10, kind: input, shape index: {}]
  %s11 = inlined_call_operand.vmem [shape: f32[64,8], index: 11, kind: input, shape index: {}]
  %s12 = inlined_call_operand.vmem [shape: f32[1,8], index: 12, kind: input, shape index: {}]
  %s13 = inlined_call_operand.vmem [shape: f32[8,8], index: 13, kind: output, shape index: {}]
  %s14 = sld [smem:[#allocation0]]
  $region93: #{gru_classifier_forward.1} parent=0
    _
  %s16 = ssub.s32 1, %s14
  %s17 = scalar_select 0, %s16, %s14
  loop: start=0, step=1, limit=4
  $region2: #{gru_classifier_forward.1} parent=0 // loop_pre_header
    _
  $region3: #{gru_classifier_forward.1} parent=0 // loop_header
    %s19 = sphi 0, %s23
    %p20 = scmp.ge.s32.totalorder %s19, 4
    %s26 = sphi 0, %s38
    %s27 = sphi 0, %s34
    %s28 = sphi 0, %s26
    %s29 = sphi 0, %s27
    %s30 = sphi 0, %s28
    %s31 = sphi 0, %s29
    %s43 = sphi 0, %s45
    %s46 = sphi 0, %s43
    %s47 = sphi 0, %s46
    %s63 = sphi 0, %s47
    %s67 = sphi 0, %s67
    %s69 = sphi 0, %s67
    %s70 = sphi 0, %s69
    %s84 = sphi 0, %s70
    %s88 = sphi 0, %s88
    %s90 = sphi 0, %s88
    %s91 = sphi 0, %s90
    %s105 = sphi 0, %s91
    %s109 = sphi 0, %s109
    %s111 = sphi 0, %s109
    %s112 = sphi 0, %s111
    %s126 = sphi 0, %s112
    %s130 = sphi 0, %s130
    %s132 = sphi 0, %s130
    %s133 = sphi 0, %s132
    %s147 = sphi 0, %s133
    %s151 = sphi 0, %s151
    %s153 = sphi 0, %s151
    %s154 = sphi 0, %s153
    %s168 = sphi 0, %s154
    %s172 = sphi 0, %s172
    %s174 = sphi 0, %s172
    %s175 = sphi 0, %s174
    %s189 = sphi 0, %s175
    %s193 = sphi 0, %s193
    %s195 = sphi 0, %s193
    %s196 = sphi 0, %s195
    %s210 = sphi 0, %s196
    %s214 = sphi 0, %s214
    %s216 = sphi 0, %s214
    %s217 = sphi 0, %s216
    %s231 = sphi 0, %s217
    %s235 = sphi 0, %s235
    %s237 = sphi 0, %s235
    %s238 = sphi 0, %s237
    %s252 = sphi 0, %s238
    %s256 = sphi 0, %s256
    %s258 = sphi 0, %s256
    %s259 = sphi 0, %s258
    %s273 = sphi 0, %s259
    %s277 = sphi 0, %s277
    %s279 = sphi 0, %s277
    %s280 = sphi 0, %s279
    %s294 = sphi 0, %s280
    %s298 = sphi 0, %s298
    %s300 = sphi 0, %s298
    %s301 = sphi 0, %s300
    %s315 = sphi 0, %s301
    %s321 = sphi 0, %s323
    %s324 = sphi 0, %s321
    %s325 = sphi 0, %s324
    %s341 = sphi 0, %s325
  $region4: #{gru_classifier_forward.1} parent=0 // loop_header_branch
    %22 = sbr.rel (%p20) target = $region8
  $region5: #{gru_classifier_forward.1} parent=0 // loop_body
    %s24 = ssub.s32 %s19, 1
    %s25 = ssub.s32 %s19, 2
    %s32 = sadd.s32 1, %s27
    %p33 = scmp.ge.s32.totalorder %s32, 2
    %s34 = scalar_select %p33, 0, %s32
    %s35 = sadd.s32 1, %s26
    %s36 = scalar_select %p33, %s35, %s26
    %p37 = scmp.ge.s32.totalorder %s36, 1
    %s38 = scalar_select %p37, 0, %s36
    %s39 = ssub.s32 %s27, %s34
    %s40 = ssub.s32 %s26, %s38
    %s41 = sor.u32 %s39, %s40
    %p42 = scmp.eq.s32.totalorder %s41, 0
    %s44 = sadd.s32 %s43, 1
    %s45 = scalar_select %p42, %s43, %s44
    %p48 = pneg %p42
    %p49 = scmp.eq.s32.totalorder %s19, 1
    %p50 = por %p48, %p49
    %p51 = scmp.ne.s32.totalorder %s43, %s46
    %p52 = scmp.eq.s32.totalorder %s19, 0
    %p53 = por %p51, %p52
    %p54 = scmp.ne.s32.totalorder %s43, %s46
    %p55 = scmp.eq.s32.totalorder %s24, 1
    %p56 = por %p54, %p55
    %p57 = scmp.ne.s32.totalorder %s46, %s47
    %p58 = scmp.eq.s32.totalorder %s24, 0
    %p59 = por %p57, %p58
    %p60 = scmp.ne.s32.totalorder %s46, %s47
    %p61 = scmp.eq.s32.totalorder %s25, 1
    %p62 = por %p60, %p61
    %p64 = scmp.ne.s32.totalorder %s47, %s63
    %p65 = scmp.eq.s32.totalorder %s25, 0
    %p66 = por %p64, %p65
    %s68 = sadd.s32 %s67, 1
    %p71 = scmp.eq.s32.totalorder %s19, 1
    %p72 = scmp.ne.s32.totalorder %s67, %s69
    %p73 = scmp.eq.s32.totalorder %s19, 0
    %p74 = por %p72, %p73
    %p75 = scmp.ne.s32.totalorder %s67, %s69
    %p76 = scmp.eq.s32.totalorder %s24, 1
    %p77 = por %p75, %p76
    %p78 = scmp.ne.s32.totalorder %s69, %s70
    %p79 = scmp.eq.s32.totalorder %s24, 0
    %p80 = por %p78, %p79
    %p81 = scmp.ne.s32.totalorder %s69, %s70
    %p82 = scmp.eq.s32.totalorder %s25, 1
    %p83 = por %p81, %p82
    %p85 = scmp.ne.s32.totalorder %s70, %s84
    %p86 = scmp.eq.s32.totalorder %s25, 0
    %p87 = por %p85, %p86
    %s89 = sadd.s32 %s88, 1
    %p92 = scmp.eq.s32.totalorder %s19, 1
    %p93 = scmp.ne.s32.totalorder %s88, %s90
    %p94 = scmp.eq.s32.totalorder %s19, 0
    %p95 = por %p93, %p94
    %p96 = scmp.ne.s32.totalorder %s88, %s90
    %p97 = scmp.eq.s32.totalorder %s24, 1
    %p98 = por %p96, %p97
    %p99 = scmp.ne.s32.totalorder %s90, %s91
    %p100 = scmp.eq.s32.totalorder %s24, 0
    %p101 = por %p99, %p100
    %p102 = scmp.ne.s32.totalorder %s90, %s91
    %p103 = scmp.eq.s32.totalorder %s25, 1
    %p104 = por %p102, %p103
    %p106 = scmp.ne.s32.totalorder %s91, %s105
    %p107 = scmp.eq.s32.totalorder %s25, 0
    %p108 = por %p106, %p107
    %s110 = sadd.s32 %s109, 1
    %p113 = scmp.eq.s32.totalorder %s19, 1
    %p114 = scmp.ne.s32.totalorder %s109, %s111
    %p115 = scmp.eq.s32.totalorder %s19, 0
    %p116 = por %p114, %p115
    %p117 = scmp.ne.s32.totalorder %s109, %s111
    %p118 = scmp.eq.s32.totalorder %s24, 1
    %p119 = por %p117, %p118
    %p120 = scmp.ne.s32.totalorder %s111, %s112
    %p121 = scmp.eq.s32.totalorder %s24, 0
    %p122 = por %p120, %p121
    %p123 = scmp.ne.s32.totalorder %s111, %s112
    %p124 = scmp.eq.s32.totalorder %s25, 1
    %p125 = por %p123, %p124
    %p127 = scmp.ne.s32.totalorder %s112, %s126
    %p128 = scmp.eq.s32.totalorder %s25, 0
    %p129 = por %p127, %p128
    %s131 = sadd.s32 %s130, 1
    %p134 = scmp.eq.s32.totalorder %s19, 1
    %p135 = scmp.ne.s32.totalorder %s130, %s132
    %p136 = scmp.eq.s32.totalorder %s19, 0
    %p137 = por %p135, %p136
    %p138 = scmp.ne.s32.totalorder %s130, %s132
    %p139 = scmp.eq.s32.totalorder %s24, 1
    %p140 = por %p138, %p139
    %p141 = scmp.ne.s32.totalorder %s132, %s133
    %p142 = scmp.eq.s32.totalorder %s24, 0
    %p143 = por %p141, %p142
    %p144 = scmp.ne.s32.totalorder %s132, %s133
    %p145 = scmp.eq.s32.totalorder %s25, 1
    %p146 = por %p144, %p145
    %p148 = scmp.ne.s32.totalorder %s133, %s147
    %p149 = scmp.eq.s32.totalorder %s25, 0
    %p150 = por %p148, %p149
    %s152 = sadd.s32 %s151, 1
    %p155 = scmp.eq.s32.totalorder %s19, 1
    %p156 = scmp.ne.s32.totalorder %s151, %s153
    %p157 = scmp.eq.s32.totalorder %s19, 0
    %p158 = por %p156, %p157
    %p159 = scmp.ne.s32.totalorder %s151, %s153
    %p160 = scmp.eq.s32.totalorder %s24, 1
    %p161 = por %p159, %p160
    %p162 = scmp.ne.s32.totalorder %s153, %s154
    %p163 = scmp.eq.s32.totalorder %s24, 0
    %p164 = por %p162, %p163
    %p165 = scmp.ne.s32.totalorder %s153, %s154
    %p166 = scmp.eq.s32.totalorder %s25, 1
    %p167 = por %p165, %p166
    %p169 = scmp.ne.s32.totalorder %s154, %s168
    %p170 = scmp.eq.s32.totalorder %s25, 0
    %p171 = por %p169, %p170
    %s173 = sadd.s32 %s172, 1
    %p176 = scmp.eq.s32.totalorder %s19, 1
    %p177 = scmp.ne.s32.totalorder %s172, %s174
    %p178 = scmp.eq.s32.totalorder %s19, 0
    %p179 = por %p177, %p178
    %p180 = scmp.ne.s32.totalorder %s172, %s174
    %p181 = scmp.eq.s32.totalorder %s24, 1
    %p182 = por %p180, %p181
    %p183 = scmp.ne.s32.totalorder %s174, %s175
    %p184 = scmp.eq.s32.totalorder %s24, 0
    %p185 = por %p183, %p184
    %p186 = scmp.ne.s32.totalorder %s174, %s175
    %p187 = scmp.eq.s32.totalorder %s25, 1
    %p188 = por %p186, %p187
    %p190 = scmp.ne.s32.totalorder %s175, %s189
    %p191 = scmp.eq.s32.totalorder %s25, 0
    %p192 = por %p190, %p191
    %s194 = sadd.s32 %s193, 1
    %p197 = scmp.eq.s32.totalorder %s19, 1
    %p198 = scmp.ne.s32.totalorder %s193, %s195
    %p199 = scmp.eq.s32.totalorder %s19, 0
    %p200 = por %p198, %p199
    %p201 = scmp.ne.s32.totalorder %s193, %s195
    %p202 = scmp.eq.s32.totalorder %s24, 1
    %p203 = por %p201, %p202
    %p204 = scmp.ne.s32.totalorder %s195, %s196
    %p205 = scmp.eq.s32.totalorder %s24, 0
    %p206 = por %p204, %p205
    %p207 = scmp.ne.s32.totalorder %s195, %s196
    %p208 = scmp.eq.s32.totalorder %s25, 1
    %p209 = por %p207, %p208
    %p211 = scmp.ne.s32.totalorder %s196, %s210
    %p212 = scmp.eq.s32.totalorder %s25, 0
    %p213 = por %p211, %p212
    %s215 = sadd.s32 %s214, 1
    %p218 = scmp.eq.s32.totalorder %s19, 1
    %p219 = scmp.ne.s32.totalorder %s214, %s216
    %p220 = scmp.eq.s32.totalorder %s19, 0
    %p221 = por %p219, %p220
    %p222 = scmp.ne.s32.totalorder %s214, %s216
    %p223 = scmp.eq.s32.totalorder %s24, 1
    %p224 = por %p222, %p223
    %p225 = scmp.ne.s32.totalorder %s216, %s217
    %p226 = scmp.eq.s32.totalorder %s24, 0
    %p227 = por %p225, %p226
    %p228 = scmp.ne.s32.totalorder %s216, %s217
    %p229 = scmp.eq.s32.totalorder %s25, 1
    %p230 = por %p228, %p229
    %p232 = scmp.ne.s32.totalorder %s217, %s231
    %p233 = scmp.eq.s32.totalorder %s25, 0
    %p234 = por %p232, %p233
    %s236 = sadd.s32 %s235, 1
    %p239 = scmp.eq.s32.totalorder %s19, 1
    %p240 = scmp.ne.s32.totalorder %s235, %s237
    %p241 = scmp.eq.s32.totalorder %s19, 0
    %p242 = por %p240, %p241
    %p243 = scmp.ne.s32.totalorder %s235, %s237
    %p244 = scmp.eq.s32.totalorder %s24, 1
    %p245 = por %p243, %p244
    %p246 = scmp.ne.s32.totalorder %s237, %s238
    %p247 = scmp.eq.s32.totalorder %s24, 0
    %p248 = por %p246, %p247
    %p249 = scmp.ne.s32.totalorder %s237, %s238
    %p250 = scmp.eq.s32.totalorder %s25, 1
    %p251 = por %p249, %p250
    %p253 = scmp.ne.s32.totalorder %s238, %s252
    %p254 = scmp.eq.s32.totalorder %s25, 0
    %p255 = por %p253, %p254
    %s257 = sadd.s32 %s256, 1
    %p260 = scmp.eq.s32.totalorder %s19, 1
    %p261 = scmp.ne.s32.totalorder %s256, %s258
    %p262 = scmp.eq.s32.totalorder %s19, 0
    %p263 = por %p261, %p262
    %p264 = scmp.ne.s32.totalorder %s256, %s258
    %p265 = scmp.eq.s32.totalorder %s24, 1
    %p266 = por %p264, %p265
    %p267 = scmp.ne.s32.totalorder %s258, %s259
    %p268 = scmp.eq.s32.totalorder %s24, 0
    %p269 = por %p267, %p268
    %p270 = scmp.ne.s32.totalorder %s258, %s259
    %p271 = scmp.eq.s32.totalorder %s25, 1
    %p272 = por %p270, %p271
    %p274 = scmp.ne.s32.totalorder %s259, %s273
    %p275 = scmp.eq.s32.totalorder %s25, 0
    %p276 = por %p274, %p275
    %s278 = sadd.s32 %s277, 1
    %p281 = scmp.eq.s32.totalorder %s19, 1
    %p282 = scmp.ne.s32.totalorder %s277, %s279
    %p283 = scmp.eq.s32.totalorder %s19, 0
    %p284 = por %p282, %p283
    %p285 = scmp.ne.s32.totalorder %s277, %s279
    %p286 = scmp.eq.s32.totalorder %s24, 1
    %p287 = por %p285, %p286
    %p288 = scmp.ne.s32.totalorder %s279, %s280
    %p289 = scmp.eq.s32.totalorder %s24, 0
    %p290 = por %p288, %p289
    %p291 = scmp.ne.s32.totalorder %s279, %s280
    %p292 = scmp.eq.s32.totalorder %s25, 1
    %p293 = por %p291, %p292
    %p295 = scmp.ne.s32.totalorder %s280, %s294
    %p296 = scmp.eq.s32.totalorder %s25, 0
    %p297 = por %p295, %p296
    %s299 = sadd.s32 %s298, 1
    %p302 = scmp.eq.s32.totalorder %s19, 1
    %p303 = scmp.ne.s32.totalorder %s298, %s300
    %p304 = scmp.eq.s32.totalorder %s19, 0
    %p305 = por %p303, %p304
    %p306 = scmp.ne.s32.totalorder %s298, %s300
    %p307 = scmp.eq.s32.totalorder %s24, 1
    %p308 = por %p306, %p307
    %p309 = scmp.ne.s32.totalorder %s300, %s301
    %p310 = scmp.eq.s32.totalorder %s24, 0
    %p311 = por %p309, %p310
    %p312 = scmp.ne.s32.totalorder %s300, %s301
    %p313 = scmp.eq.s32.totalorder %s25, 1
    %p314 = por %p312, %p313
    %p316 = scmp.ne.s32.totalorder %s301, %s315
    %p317 = scmp.eq.s32.totalorder %s25, 0
    %p318 = por %p316, %p317
    %s319 = ssub.s32 %s26, %s38
    %p320 = scmp.eq.s32.totalorder %s319, 0
    %s322 = sadd.s32 %s321, 1
    %s323 = scalar_select %p320, %s321, %s322
    %p326 = pneg %p320
    %p327 = scmp.eq.s32.totalorder %s19, 1
    %p328 = por %p326, %p327
    %p329 = scmp.ne.s32.totalorder %s321, %s324
    %p330 = scmp.eq.s32.totalorder %s19, 0
    %p331 = por %p329, %p330
    %p332 = scmp.ne.s32.totalorder %s321, %s324
    %p333 = scmp.eq.s32.totalorder %s24, 1
    %p334 = por %p332, %p333
    %p335 = scmp.ne.s32.totalorder %s324, %s325
    %p336 = scmp.eq.s32.totalorder %s24, 0
    %p337 = por %p335, %p336
    %p338 = scmp.ne.s32.totalorder %s324, %s325
    %p339 = scmp.eq.s32.totalorder %s25, 1
    %p340 = por %p338, %p339
    %p342 = scmp.ne.s32.totalorder %s325, %s341
    %p343 = scmp.eq.s32.totalorder %s25, 0
    %p344 = por %p342, %p343
    %p345 = scmp.le.s32.totalorder 1, %s19
    %p346 = scmp.lt.s32.totalorder %s19, 3
    %p347 = pnand %p345, %p346
    %p348 = pneg %p347
    // Predicated region
    $region9: #{gru_classifier_forward.1} parent=5 // pred_check
      _
    $region10: #{gru_classifier_forward.1} parent=5 // pred_check_branch
      %350 = sbr.rel (%p347) target = $region12
    $region11: #{gru_classifier_forward.1} parent=5 // pred_region
      %s351 = ssub.s32 %s19, 1
      // Predicated region
      $region13: #{gru_classifier_forward.1} parent=11 // pred_check
        %p352 = pneg %p80
      $region14: #{gru_classifier_forward.1} parent=11 // pred_check_branch
        %354 = sbr.rel (%p352) target = $region16
      $region15: #{gru_classifier_forward.1} parent=11 // pred_region
        _
      $region16: #{gru_classifier_forward.1} parent=11 // pred_fallthru
        _
      // Predicated region
      $region17: #{gru_classifier_forward.1} parent=11 // pred_check
        %p355 = pneg %p101
      $region18: #{gru_classifier_forward.1} parent=11 // pred_check_branch
        %357 = sbr.rel (%p355) target = $region20
      $region19: #{gru_classifier_forward.1} parent=11 // pred_region
        _
      $region20: #{gru_classifier_forward.1} parent=11 // pred_fallthru
        _
      // Predicated region
      $region21: #{gru_classifier_forward.1} parent=11 // pred_check
        %p358 = pneg %p122
      $region22: #{gru_classifier_forward.1} parent=11 // pred_check_branch
        %360 = sbr.rel (%p358) target = $region24
      $region23: #{gru_classifier_forward.1} parent=11 // pred_region
        _
      $region24: #{gru_classifier_forward.1} parent=11 // pred_fallthru
        _
      // Predicated region
      $region25: #{gru_classifier_forward.1} parent=11 // pred_check
        %p361 = pneg %p143
      $region26: #{gru_classifier_forward.1} parent=11 // pred_check_branch
        %363 = sbr.rel (%p361) target = $region28
      $region27: #{gru_classifier_forward.1} parent=11 // pred_region
        _
      $region28: #{gru_classifier_forward.1} parent=11 // pred_fallthru
        _
      // Predicated region
      $region29: #{gru_classifier_forward.1} parent=11 // pred_check
        %p364 = pneg %p164
      $region30: #{gru_classifier_forward.1} parent=11 // pred_check_branch
        %366 = sbr.rel (%p364) target = $region32
      $region31: #{gru_classifier_forward.1} parent=11 // pred_region
        _
      $region32: #{gru_classifier_forward.1} parent=11 // pred_fallthru
        _
      // Predicated region
      $region33: #{gru_classifier_forward.1} parent=11 // pred_check
        %p367 = pneg %p185
      $region34: #{gru_classifier_forward.1} parent=11 // pred_check_branch
        %369 = sbr.rel (%p367) target = $region36
      $region35: #{gru_classifier_forward.1} parent=11 // pred_region
        _
      $region36: #{gru_classifier_forward.1} parent=11 // pred_fallthru
        _
      // Predicated region
      $region37: #{gru_classifier_forward.1} parent=11 // pred_check
        %p370 = pneg %p206
      $region38: #{gru_classifier_forward.1} parent=11 // pred_check_branch
        %372 = sbr.rel (%p370) target = $region40
      $region39: #{gru_classifier_forward.1} parent=11 // pred_region
        _
      $region40: #{gru_classifier_forward.1} parent=11 // pred_fallthru
        _
      // Predicated region
      $region41: #{gru_classifier_forward.1} parent=11 // pred_check
        %p373 = pneg %p227
      $region42: #{gru_classifier_forward.1} parent=11 // pred_check_branch
        %375 = sbr.rel (%p373) target = $region44
      $region43: #{gru_classifier_forward.1} parent=11 // pred_region
        _
      $region44: #{gru_classifier_forward.1} parent=11 // pred_fallthru
        _
      // Predicated region
      $region45: #{gru_classifier_forward.1} parent=11 // pred_check
        %p376 = pneg %p248
      $region46: #{gru_classifier_forward.1} parent=11 // pred_check_branch
        %378 = sbr.rel (%p376) target = $region48
      $region47: #{gru_classifier_forward.1} parent=11 // pred_region
        _
      $region48: #{gru_classifier_forward.1} parent=11 // pred_fallthru
        _
      // Predicated region
      $region49: #{gru_classifier_forward.1} parent=11 // pred_check
        %p379 = pneg %p269
      $region50: #{gru_classifier_forward.1} parent=11 // pred_check_branch
        %381 = sbr.rel (%p379) target = $region52
      $region51: #{gru_classifier_forward.1} parent=11 // pred_region
        _
      $region52: #{gru_classifier_forward.1} parent=11 // pred_fallthru
        _
      // Predicated region
      $region53: #{gru_classifier_forward.1} parent=11 // pred_check
        %p382 = pneg %p290
      $region54: #{gru_classifier_forward.1} parent=11 // pred_check_branch
        %384 = sbr.rel (%p382) target = $region56
      $region55: #{gru_classifier_forward.1} parent=11 // pred_region
        _
      $region56: #{gru_classifier_forward.1} parent=11 // pred_fallthru
        _
      // Predicated region
      $region57: #{gru_classifier_forward.1} parent=11 // pred_check
        %p385 = pneg %p311
      $region58: #{gru_classifier_forward.1} parent=11 // pred_check_branch
        %387 = sbr.rel (%p385) target = $region60
      $region59: #{gru_classifier_forward.1} parent=11 // pred_region
        _
      $region60: #{gru_classifier_forward.1} parent=11 // pred_fallthru
        _
    $region12: #{gru_classifier_forward.1} parent=5 // pred_fallthru
      _
    %p388 = scmp.lt.s32.totalorder %s19, 2
    // Predicated region
    $region61: #{gru_classifier_forward.1} parent=5 // pred_check
      %p389 = pneg %p388
    $region62: #{gru_classifier_forward.1} parent=5 // pred_check_branch
      %391 = sbr.rel (%p389) target = $region64
    $region63: #{gru_classifier_forward.1} parent=5 // pred_region
      // Predicated region
      $region65: #{gru_classifier_forward.1} parent=63 // pred_check
        %p392 = pneg %p53
      $region66: #{gru_classifier_forward.1} parent=63 // pred_check_branch
        %394 = sbr.rel (%p392) target = $region68
      $region67: #{gru_classifier_forward.1} parent=63 // pred_region
        %s395 = smul.u32 4, %s27
        %p396 = scmp.lt.s32.totalorder %s395, 7
        %s397 = scalar_select %p396, %s395, 7
        %p398 = scmp.lt.s32.totalorder %s26, 0
        %s399 = scalar_select %p398, %s26, 0
        %s400 = sadd.s32 %s399, %s397
        %s401 = smul.addr %s400, 8
        %s402 = scalar_lea.vmem %s0, %s401
        %s403 = smul.u32 4, %s27
      $region68: #{gru_classifier_forward.1} parent=63 // pred_fallthru
        _
    $region64: #{gru_classifier_forward.1} parent=5 // pred_fallthru
      _
    %p404 = scmp.le.s32.totalorder 1, %s19
    %p405 = scmp.lt.s32.totalorder %s19, 3
    %p406 = pnand %p404, %p405
    %p407 = pneg %p406
    // Predicated region
    $region69: #{gru_classifier_forward.1} parent=5 // pred_check
      _
    $region70: #{gru_classifier_forward.1} parent=5 // pred_check_branch
      %409 = sbr.rel (%p406) target = $region72
    $region71: #{gru_classifier_forward.1} parent=5 // pred_region
      %s410 = ssub.s32 %s19, 1
      %s411 = smul.u32 4, %s29
      %p412 = scmp.lt.s32.totalorder %s411, 7
      %s413 = scalar_select %p412, %s411, 7
      %p414 = scmp.lt.s32.totalorder %s28, 0
      %s415 = scalar_select %p414, %s28, 0
      %s416 = sadd.s32 %s415, %s413
      %s417 = smul.addr %s416, 8
      %s418 = scalar_lea.vmem %s0, %s417
      %p419 = pneg %p59
      %p420 = pneg %p56
      %p421 = pneg %p80
      %p422 = pneg %p77
      %p423 = pneg %p101
      %p424 = pneg %p98
      %p425 = pneg %p122
      %p426 = pneg %p119
      %p427 = pneg %p143
      %p428 = pneg %p140
      %p429 = pneg %p164
      %p430 = pneg %p161
      %p431 = pneg %p185
      %p432 = pneg %p182
      %p433 = pneg %p206
      %p434 = pneg %p203
      %p435 = pneg %p227
      %p436 = pneg %p224
      %p437 = pneg %p248
      %p438 = pneg %p245
      %p439 = pneg %p269
      %p440 = pneg %p266
      %p441 = pneg %p290
      %p442 = pneg %p287
      %p443 = pneg %p311
      %p444 = pneg %p308
      %p445 = pneg %p337
      %p446 = pneg %p334
      %p447 = scmp.lt.s32.totalorder %s28, 0
      %s448 = scalar_select %p447, %s28, 0
      %s449 = smul.addr %s448, 8
      %s450 = scalar_lea.vmem %s13, %s449
      %s451 = smul.u32 4, %s29
      %p452 = scmp.lt.s32.totalorder %s451, 7
      %s453 = scalar_select %p452, %s451, 7
      %p454 = scmp.lt.s32.totalorder %s28, 0
      %s455 = scalar_select %p454, %s28, 0
      %s456 = sadd.s32 %s455, %s453
      %s457 = smul.addr %s456, 8
      %s458 = scalar_lea.vmem %s0, %s457
      %s459 = smul.u32 4, %s29
      %p460 = scmp.lt.s32.totalorder %s28, 0
      %s461 = scalar_select %p460, %s28, 0
      %s462 = smul.addr %s461, 8
      %s463 = scalar_lea.vmem %s13, %s462
      %p464 = scmp.eq.s32.totalorder %s29, 0
      // Predicated region
      $region73: #{gru_classifier_forward.1} parent=71 // pred_check
        %p465 = pneg %p464
      $region74: #{gru_classifier_forward.1} parent=71 // pred_check_branch
        %467 = sbr.rel (%p465) target = $region76
      $region75: #{gru_classifier_forward.1} parent=71 // pred_region
        %vm468 = vcmask 523264
        %469 = vst.msk [vmem:[#allocation3] sm:$0xff] %vm468, 0.0
      $region76: #{gru_classifier_forward.1} parent=71 // pred_fallthru
        _
      %v470 = vld [vmem:[%s458] sm:$0xff]
      %v471 = vld [vmem:[%s458 + $0x8] sm:$0xff]
      %v472 = vld [vmem:[%s458 + $0x10] sm:$0xff]
      %v473 = vld [vmem:[%s458 + $0x18] sm:$0xff]
      %v474 = vld [vmem:[%s1] sm:$0xff]
      %v475 = vld [vmem:[%s1 + $0x8] sm:$0xff]
      %v476 = vld [vmem:[%s2] sm:$0x1]
      %v478 = vlaneseq
      %v479 = vshrl.u32 %v478, 7
      %v480 = vsub.s32 0, %v479
      %v481 = vrot.slane %v476, %v480
      %vm483 = vcmask 130048
      %v485 = vsel %vm483, %v470, 0
      %v488 = vsel %vm483, %v471, 0
      %v491 = vsel %vm483, %v472, 0
      %v494 = vsel %vm483, %v473, 0
      %496 = vmatprep.subr.mxu0 0.0
      %497 = vmatpush1.msra.mxu0 %v474
      %498 = vmatprep.subr.mxu0 0.0
      %499 = vmatpush1.msra.mxu0 %v475
      %500 = vmatprep.subr.mxu0 0.0
      %501 = vmatpush1.msra.mxu0 0.0
      %502 = vmatprep.subr.mxu0 0.0
      %503 = vmatpush1.msra.mxu0 0.0
      %504 = vmatprep.subr.mxu0 0.0
      %505 = vmatpush1.msra.mxu0 0.0
      %506 = vmatprep.subr.mxu0 0.0
      %507 = vmatpush1.msra.mxu0 0.0
      %508 = vmatprep.subr.mxu0 0.0
      %509 = vmatpush1.msra.mxu0 0.0
      %510 = vmatprep.subr.mxu0 0.0
      %511 = vmatpush1.msra.mxu0 0.0
      %512 = vmatprep.subr.mxu0 0.0
      %513 = vmatpush1.msra.mxu0 0.0
      %514 = vmatprep.subr.mxu0 0.0
      %515 = vmatpush1.msra.mxu0 0.0
      %516 = vmatprep.subr.mxu0 0.0
      %517 = vmatpush1.msra.mxu0 0.0
      %518 = vmatprep.subr.mxu0 0.0
      %519 = vmatpush1.msra.mxu0 0.0
      %520 = vmatprep.subr.mxu0 0.0
      %521 = vmatpush1.msra.mxu0 0.0
      %522 = vmatprep.subr.mxu0 0.0
      %523 = vmatpush1.msra.mxu0 0.0
      %524 = vmatprep.subr.mxu0 0.0
      %525 = vmatpush1.msra.mxu0 0.0
      %526 = vmatprep.subr.mxu0 0.0
      %527 = vmatpush1.msra.mxu0 0.0
      %528 = vmatprep.subr.mxu0 0.0
      %529 = vmatpush1.msra.mxu0 0.0
      %530 = vmatprep.subr.mxu0 0.0
      %531 = vmatpush1.msra.mxu0 0.0
      %532 = vmatprep.subr.mxu0 0.0
      %533 = vmatpush1.msra.mxu0 0.0
      %534 = vmatprep.subr.mxu0 0.0
      %535 = vmatpush1.msra.mxu0 0.0
      %536 = vmatprep.subr.mxu0 0.0
      %537 = vmatpush1.msra.mxu0 0.0
      %538 = vmatprep.subr.mxu0 0.0
      %539 = vmatpush1.msra.mxu0 0.0
      %540 = vmatprep.subr.mxu0 0.0
      %541 = vmatpush1.msra.mxu0 0.0
      %542 = vmatprep.subr.mxu0 0.0
      %543 = vmatpush1.msra.mxu0 0.0
      %544 = vmatprep.subr.mxu0 0.0
      %545 = vmatpush1.msra.mxu0 0.0
      %546 = vmatprep.subr.mxu0 0.0
      %547 = vmatpush1.msra.mxu0 0.0
      %548 = vmatprep.subr.mxu0 0.0
      %549 = vmatpush1.msra.mxu0 0.0
      %550 = vmatprep.subr.mxu0 0.0
      %551 = vmatpush1.msra.mxu0 0.0
      %552 = vmatprep.subr.mxu0 0.0
      %553 = vmatpush1.msra.mxu0 0.0
      %554 = vmatprep.subr.mxu0 0.0
      %555 = vmatpush1.msra.mxu0 0.0
      %556 = vmatprep.subr.mxu0 0.0
      %557 = vmatpush1.msra.mxu0 0.0
      %558 = vmatprep.subr.mxu0 0.0
      %559 = vmatpush1.msra.mxu0 0.0
      %560 = vmatprep.mubr.f32.mxu0 0.0
      %561 = vmatmul.mubr.f32.gmra.mrb[0].mxu0 %v485
      %v562 = vpop.f32.mrb[0].mxu0
      %v563 = vadd.f32 %v481, %v562
      %v564 = vpop.f32.mrb[0].mxu0
      %565 = vmatprep.mubr.f32.mxu0 0.0
      %566 = vmatmul.mubr.f32.gmra.mrb[0].mxu0 %v488
      %v567 = vpop.f32.mrb[0].mxu0
      %v568 = vadd.f32 %v481, %v567
      %v569 = vpop.f32.mrb[0].mxu0
      %570 = vmatprep.mubr.f32.mxu0 0.0
      %571 = vmatmul.mubr.f32.gmra.mrb[0].mxu0 %v491
      %v572 = vpop.f32.mrb[0].mxu0
      %v573 = vadd.f32 %v481, %v572
      %v574 = vpop.f32.mrb[0].mxu0
      %575 = vmatprep.mubr.f32.mxu0 0.0
      %576 = vmatmul.mubr.f32.gmra.mrb[0].mxu0 %v494
      %v577 = vpop.f32.mrb[0].mxu0
      %v578 = vadd.f32 %v481, %v577
      %v579 = vpop.f32.mrb[0].mxu0
      %580 = vdwg.mxu0
      %v581 = vmax.f32 %v563, 0.0
      %v582 = vmax.f32 %v568, 0.0
      %v583 = vmax.f32 %v573, 0.0
      %v584 = vmax.f32 %v578, 0.0
      %585 = vadd.xlane.f32.xlu0 %v581
      %v586 = vpop.xlane.xlu0 %585
      %587 = vadd.xlane.f32.xlu0 %v582
      %v588 = vpop.xlane.xlu0 %587
      %589 = vadd.xlane.f32.xlu0 %v583
      %v590 = vpop.xlane.xlu0 %589
      %591 = vadd.xlane.f32.xlu0 %v584
      %v592 = vpop.xlane.xlu0 %591
      %v593 = vrcp.pop 128.0
      %v594 = vmul.f32 %v586, %v593
      %v595 = vmul.f32 %v588, %v593
      %v596 = vmul.f32 %v590, %v593
      %v597 = vmul.f32 %v592, %v593
      %v598 = vmul.f32 %v581, %v581
      %v599 = vmul.f32 %v582, %v582
      %v600 = vmul.f32 %v583, %v583
      %v601 = vmul.f32 %v584, %v584
      %602 = vadd.xlane.f32.xlu0 %v598
      %v603 = vpop.xlane.xlu0 %602
      %604 = vadd.xlane.f32.xlu0 %v599
      %v605 = vpop.xlane.xlu0 %604
      %606 = vadd.xlane.f32.xlu0 %v600
      %v607 = vpop.xlane.xlu0 %606
      %608 = vadd.xlane.f32.xlu0 %v601
      %v609 = vpop.xlane.xlu0 %608
      %v610 = vmul.f32 %v603, %v593
      %v611 = vmul.f32 %v605, %v593
      %v612 = vmul.f32 %v607, %v593
      %v613 = vmul.f32 %v609, %v593
      %v614 = vmul.f32 %v594, %v594
      %v615 = vmul.f32 %v595, %v595
      %v616 = vmul.f32 %v596, %v596
      %v617 = vmul.f32 %v597, %v597
      %v618 = vsub.f32 %v610, %v614
      %v619 = vsub.f32 %v611, %v615
      %v620 = vsub.f32 %v612, %v616
      %v621 = vsub.f32 %v613, %v617
      %v622 = vmax.f32 %v618, 0.0
      %v623 = vmax.f32 %v619, 0.0
      %v624 = vmax.f32 %v620, 0.0
      %v625 = vmax.f32 %v621, 0.0
      %v626 = vsub.f32 %v581, %v594
      %v627 = vsub.f32 %v582, %v595
      %v628 = vsub.f32 %v583, %v596
      %v629 = vsub.f32 %v584, %v597
      %v630 = vadd.f32 %v622, 1e-05
      %v631 = vadd.f32 %v623, 1e-05
      %v632 = vadd.f32 %v624, 1e-05
      %v633 = vadd.f32 %v625, 1e-05
      %v634 = vrsqrt.pop %v630
      %v635 = vrsqrt.pop %v631
      %v636 = vrsqrt.pop %v632
      %v637 = vrsqrt.pop %v633
      %v638 = vmul.f32 %v626, %v634
      %v639 = vmul.f32 %v627, %v635
      %v640 = vmul.f32 %v628, %v636
      %v641 = vmul.f32 %v629, %v637
      %v642 = vld [vmem:[%s3] sm:$0xff]
      %v643 = vld [vmem:[%s3 + $0x8] sm:$0xff]
      %v644 = vld [vmem:[%s3 + $0x10] sm:$0xff]
      %v645 = vld [vmem:[%s3 + $0x18] sm:$0xff]
      %v646 = vld [vmem:[%s3 + $0x20] sm:$0xff]
      %v647 = vld [vmem:[%s3 + $0x28] sm:$0xff]
      %v648 = vld [vmem:[%s3 + $0x30] sm:$0xff]
      %v649 = vld [vmem:[%s3 + $0x38] sm:$0xff]
      %v650 = vld [vmem:[%s3 + $0x40] sm:$0xff]
      %v651 = vld [vmem:[%s3 + $0x48] sm:$0xff]
      %v652 = vld [vmem:[%s3 + $0x50] sm:$0xff]
      %v653 = vld [vmem:[%s3 + $0x58] sm:$0xff]
      %v654 = vld [vmem:[%s3 + $0x60] sm:$0xff]
      %v655 = vld [vmem:[%s3 + $0x68] sm:$0xff]
      %v656 = vld [vmem:[%s3 + $0x70] sm:$0xff]
      %v657 = vld [vmem:[%s3 + $0x78] sm:$0xff]
      %v658 = vld [vmem:[%s4] sm:$0x1]
      %v660 = vlaneseq
      %v661 = vshrl.u32 %v660, 7
      %v662 = vsub.s32 0, %v661
      %v663 = vrot.slane %v658, %v662
      %665 = vmatprep.subr.mxu0 0.0
      %666 = vmatpush1.msra.mxu0 %v642
      %667 = vmatprep.subr.mxu0 0.0
      %668 = vmatpush1.msra.mxu0 %v643
      %669 = vmatprep.subr.mxu0 0.0
      %670 = vmatpush1.msra.mxu0 %v644
      %671 = vmatprep.subr.mxu0 0.0
      %672 = vmatpush1.msra.mxu0 %v645
      %673 = vmatprep.subr.mxu0 0.0
      %674 = vmatpush1.msra.mxu0 %v646
      %675 = vmatprep.subr.mxu0 0.0
      %676 = vmatpush1.msra.mxu0 %v647
      %677 = vmatprep.subr.mxu0 0.0
      %678 = vmatpush1.msra.mxu0 %v648
      %679 = vmatprep.subr.mxu0 0.0
      %680 = vmatpush1.msra.mxu0 %v649
      %681 = vmatprep.subr.mxu0 0.0
      %682 = vmatpush1.msra.mxu0 %v650
      %683 = vmatprep.subr.mxu0 0.0
      %684 = vmatpush1.msra.mxu0 %v651
      %685 = vmatprep.subr.mxu0 0.0
      %686 = vmatpush1.msra.mxu0 %v652
      %687 = vmatprep.subr.mxu0 0.0
      %688 = vmatpush1.msra.mxu0 %v653
      %689 = vmatprep.subr.mxu0 0.0
      %690 = vmatpush1.msra.mxu0 %v654
      %691 = vmatprep.subr.mxu0 0.0
      %692 = vmatpush1.msra.mxu0 %v655
      %693 = vmatprep.subr.mxu0 0.0
      %694 = vmatpush1.msra.mxu0 %v656
      %695 = vmatprep.subr.mxu0 0.0
      %696 = vmatpush1.msra.mxu0 %v657
      %697 = vmatprep.subr.mxu0 0.0
      %698 = vmatpush1.msra.mxu0 0.0
      %699 = vmatprep.subr.mxu0 0.0
      %700 = vmatpush1.msra.mxu0 0.0
      %701 = vmatprep.subr.mxu0 0.0
      %702 = vmatpush1.msra.mxu0 0.0
      %703 = vmatprep.subr.mxu0 0.0
      %704 = vmatpush1.msra.mxu0 0.0
      %705 = vmatprep.subr.mxu0 0.0
      %706 = vmatpush1.msra.mxu0 0.0
      %707 = vmatprep.subr.mxu0 0.0
      %708 = vmatpush1.msra.mxu0 0.0
      %709 = vmatprep.subr.mxu0 0.0
      %710 = vmatpush1.msra.mxu0 0.0
      %711 = vmatprep.subr.mxu0 0.0
      %712 = vmatpush1.msra.mxu0 0.0
      %713 = vmatprep.subr.mxu0 0.0
      %714 = vmatpush1.msra.mxu0 0.0
      %715 = vmatprep.subr.mxu0 0.0
      %716 = vmatpush1.msra.mxu0 0.0
      %717 = vmatprep.subr.mxu0 0.0
      %718 = vmatpush1.msra.mxu0 0.0
      %719 = vmatprep.subr.mxu0 0.0
      %720 = vmatpush1.msra.mxu0 0.0
      %721 = vmatprep.subr.mxu0 0.0
      %722 = vmatpush1.msra.mxu0 0.0
      %723 = vmatprep.subr.mxu0 0.0
      %724 = vmatpush1.msra.mxu0 0.0
      %725 = vmatprep.subr.mxu0 0.0
      %726 = vmatpush1.msra.mxu0 0.0
      %727 = vmatprep.subr.mxu0 0.0
      %728 = vmatpush1.msra.mxu0 0.0
      %729 = vmatprep.mubr.f32.mxu0 0.0
      %730 = vmatmul.mubr.f32.gmra.mrb[0].mxu0 %v638
      %v731 = vpop.f32.mrb[0].mxu0
      %v732 = vadd.f32 %v663, %v731
      %v733 = vpop.f32.mrb[0].mxu0
      %734 = vmatprep.mubr.f32.mxu0 0.0
      %735 = vmatmul.mubr.f32.gmra.mrb[0].mxu0 %v639
      %v736 = vpop.f32.mrb[0].mxu0
      %v737 = vadd.f32 %v663, %v736
      %v738 = vpop.f32.mrb[0].mxu0
      %739 = vmatprep.mubr.f32.mxu0 0.0
      %740 = vmatmul.mubr.f32.gmra.mrb[0].mxu0 %v640
      %v741 = vpop.f32.mrb[0].mxu0
      %v742 = vadd.f32 %v663, %v741
      %v743 = vpop.f32.mrb[0].mxu0
      %744 = vmatprep.mubr.f32.mxu0 0.0
      %745 = vmatmul.mubr.f32.gmra.mrb[0].mxu0 %v641
      %v746 = vpop.f32.mrb[0].mxu0
      %v747 = vadd.f32 %v663, %v746
      %v748 = vpop.f32.mrb[0].mxu0
      %749 = vdwg.mxu0
      %v750 = vmax.f32 %v732, 0.0
      %v751 = vmax.f32 %v737, 0.0
      %v752 = vmax.f32 %v742, 0.0
      %v753 = vmax.f32 %v747, 0.0
      %vm754 = vcmask 523264
      %v755 = vsel %vm754, %v750, 0.0
      %756 = vadd.xlane.f32.xlu0 %v755
      %v757 = vpop.xlane.xlu0 %756
      %v758 = vsel %vm754, %v751, 0.0
      %759 = vadd.xlane.f32.xlu0 %v758
      %v760 = vpop.xlane.xlu0 %759
      %v761 = vsel %vm754, %v752, 0.0
      %762 = vadd.xlane.f32.xlu0 %v761
      %v763 = vpop.xlane.xlu0 %762
      %v764 = vsel %vm754, %v753, 0.0
      %765 = vadd.xlane.f32.xlu0 %v764
      %v766 = vpop.xlane.xlu0 %765
      %v767 = vrcp.pop 64.0
      %v768 = vmul.f32 %v757, %v767
      %v769 = vmul.f32 %v760, %v767
      %v770 = vmul.f32 %v763, %v767
      %v771 = vmul.f32 %v766, %v767
      %v772 = vmul.f32 %v750, %v750
      %v773 = vmul.f32 %v751, %v751
      %v774 = vmul.f32 %v752, %v752
      %v775 = vmul.f32 %v753, %v753
      %v776 = vsel %vm754, %v772, 0.0
      %777 = vadd.xlane.f32.xlu0 %v776
      %v778 = vpop.xlane.xlu0 %777
      %v779 = vsel %vm754, %v773, 0.0
      %780 = vadd.xlane.f32.xlu0 %v779
      %v781 = vpop.xlane.xlu0 %780
      %v782 = vsel %vm754, %v774, 0.0
      %783 = vadd.xlane.f32.xlu0 %v782
      %v784 = vpop.xlane.xlu0 %783
      %v785 = vsel %vm754, %v775, 0.0
      %786 = vadd.xlane.f32.xlu0 %v785
      %v787 = vpop.xlane.xlu0 %786
      %v788 = vmul.f32 %v778, %v767
      %v789 = vmul.f32 %v781, %v767
      %v790 = vmul.f32 %v784, %v767
      %v791 = vmul.f32 %v787, %v767
      %v792 = vmul.f32 %v768, %v768
      %v793 = vmul.f32 %v769, %v769
      %v794 = vmul.f32 %v770, %v770
      %v795 = vmul.f32 %v771, %v771
      %v796 = vsub.f32 %v788, %v792
      %v797 = vsub.f32 %v789, %v793
      %v798 = vsub.f32 %v790, %v794
      %v799 = vsub.f32 %v791, %v795
      %v800 = vmax.f32 %v796, 0.0
      %v801 = vmax.f32 %v797, 0.0
      %v802 = vmax.f32 %v798, 0.0
      %v803 = vmax.f32 %v799, 0.0
      %v804 = vsub.f32 %v750, %v768
      %v805 = vsub.f32 %v751, %v769
      %v806 = vsub.f32 %v752, %v770
      %v807 = vsub.f32 %v753, %v771
      %v808 = vadd.f32 %v800, 1e-05
      %v809 = vadd.f32 %v801, 1e-05
      %v810 = vadd.f32 %v802, 1e-05
      %v811 = vadd.f32 %v803, 1e-05
      %v812 = vrsqrt.pop %v808
      %v813 = vrsqrt.pop %v809
      %v814 = vrsqrt.pop %v810
      %v815 = vrsqrt.pop %v811
      %v816 = vmul.f32 %v804, %v812
      %v817 = vmul.f32 %v805, %v813
      %v818 = vmul.f32 %v806, %v814
      %v819 = vmul.f32 %v807, %v815
      %v820 = vld [vmem:[%s5] sm:$0xff]
      %v821 = vld [vmem:[%s5 + $0x8] sm:$0xff]
      %v822 = vld [vmem:[%s5 + $0x10] sm:$0xff]
      %v823 = vld [vmem:[%s5 + $0x18] sm:$0xff]
      %v824 = vld [vmem:[%s5 + $0x20] sm:$0xff]
      %v825 = vld [vmem:[%s5 + $0x28] sm:$0xff]
      %v826 = vld [vmem:[%s5 + $0x30] sm:$0xff]
      %v827 = vld [vmem:[%s5 + $0x38] sm:$0xff]
      %v828 = vld [vmem:[%s5 + $0x40] sm:$0xff]
      %v829 = vld [vmem:[%s5 + $0x48] sm:$0xff]
      %v830 = vld [vmem:[%s5 + $0x50] sm:$0xff]
      %v831 = vld [vmem:[%s5 + $0x58] sm:$0xff]
      %v832 = vld [vmem:[%s5 + $0x60] sm:$0xff]
      %v833 = vld [vmem:[%s5 + $0x68] sm:$0xff]
      %v834 = vld [vmem:[%s5 + $0x70] sm:$0xff]
      %v835 = vld [vmem:[%s5 + $0x78] sm:$0xff]
      %v836 = vld [vmem:[%s6] sm:$0x3]
      %v838 = vlaneseq
      %v839 = vshrl.u32 %v838, 7
      %v840 = vsub.s32 0, %v839
      %v841 = vrot.slane %v836, %v840
      %v842 = vlaneseq
      %v843 = vshrl.u32 %v842, 7
      %v844 = vsub.s32 1, %v843
      %v845 = vrot.slane %v836, %v844
      %v849 = vsel %vm754, %v816, 0
      %v852 = vsel %vm754, %v817, 0
      %v855 = vsel %vm754, %v818, 0
      %v858 = vsel %vm754, %v819, 0
      %860 = vmatprep.subr.mxu0 %v821
      %861 = vmatpush1.msra.mxu0 %v820
      %862 = vmatprep.subr.mxu0 %v823
      %863 = vmatpush1.msra.mxu0 %v822
      %864 = vmatprep.subr.mxu0 %v825
      %865 = vmatpush1.msra.mxu0 %v824
      %866 = vmatprep.subr.mxu0 %v827
      %867 = vmatpush1.msra.mxu0 %v826
      %868 = vmatprep.subr.mxu0 %v829
      %869 = vmatpush1.msra.mxu0 %v828
      %870 = vmatprep.subr.mxu0 %v831
      %871 = vmatpush1.msra.mxu0 %v830
      %872 = vmatprep.subr.mxu0 %v833
      %873 = vmatpush1.msra.mxu0 %v832
      %874 = vmatprep.subr.mxu0 %v835
      %875 = vmatpush1.msra.mxu0 %v834
      %876 = vmatprep.subr.mxu0 0.0
      %877 = vmatpush1.msra.mxu0 0.0
      %878 = vmatprep.subr.mxu0 0.0
      %879 = vmatpush1.msra.mxu0 0.0
      %880 = vmatprep.subr.mxu0 0.0
      %881 = vmatpush1.msra.mxu0 0.0
      %882 = vmatprep.subr.mxu0 0.0
      %883 = vmatpush1.msra.mxu0 0.0
      %884 = vmatprep.subr.mxu0 0.0
      %885 = vmatpush1.msra.mxu0 0.0
      %886 = vmatprep.subr.mxu0 0.0
      %887 = vmatpush1.msra.mxu0 0.0
      %888 = vmatprep.subr.mxu0 0.0
      %889 = vmatpush1.msra.mxu0 0.0
      %890 = vmatprep.subr.mxu0 0.0
      %891 = vmatpush1.msra.mxu0 0.0
      %892 = vmatprep.subr.mxu0 0.0
      %893 = vmatpush1.msra.mxu0 0.0
      %894 = vmatprep.subr.mxu0 0.0
      %895 = vmatpush1.msra.mxu0 0.0
      %896 = vmatprep.subr.mxu0 0.0
      %897 = vmatpush1.msra.mxu0 0.0
      %898 = vmatprep.subr.mxu0 0.0
      %899 = vmatpush1.msra.mxu0 0.0
      %900 = vmatprep.subr.mxu0 0.0
      %901 = vmatpush1.msra.mxu0 0.0
      %902 = vmatprep.subr.mxu0 0.0
      %903 = vmatpush1.msra.mxu0 0.0
      %904 = vmatprep.subr.mxu0 0.0
      %905 = vmatpush1.msra.mxu0 0.0
      %906 = vmatprep.subr.mxu0 0.0
      %907 = vmatpush1.msra.mxu0 0.0
      %908 = vmatprep.subr.mxu0 0.0
      %909 = vmatpush1.msra.mxu0 0.0
      %910 = vmatprep.subr.mxu0 0.0
      %911 = vmatpush1.msra.mxu0 0.0
      %912 = vmatprep.subr.mxu0 0.0
      %913 = vmatpush1.msra.mxu0 0.0
      %914 = vmatprep.subr.mxu0 0.0
      %915 = vmatpush1.msra.mxu0 0.0
      %916 = vmatprep.subr.mxu0 0.0
      %917 = vmatpush1.msra.mxu0 0.0
      %918 = vmatprep.subr.mxu0 0.0
      %919 = vmatpush1.msra.mxu0 0.0
      %920 = vmatprep.subr.mxu0 0.0
      %921 = vmatpush1.msra.mxu0 0.0
      %922 = vmatprep.subr.mxu0 0.0
      %923 = vmatpush1.msra.mxu0 0.0
      %924 = vmatprep.mubr.f32.mxu0 0.0
      %925 = vmatmul.mubr.f32.gmra.mrb[0].mxu0 %v849
      %v926 = vpop.f32.mrb[0].mxu0
      %v927 = vadd.f32 %v841, %v926
      %v928 = vpop.f32.mrb[0].mxu0
      %v929 = vadd.f32 %v845, %v928
      %930 = vmatprep.mubr.f32.mxu0 0.0
      %931 = vmatmul.mubr.f32.gmra.mrb[0].mxu0 %v852
      %v932 = vpop.f32.mrb[0].mxu0
      %v933 = vadd.f32 %v841, %v932
      %v934 = vpop.f32.mrb[0].mxu0
      %v935 = vadd.f32 %v845, %v934
      %936 = vmatprep.mubr.f32.mxu0 0.0
      %937 = vmatmul.mubr.f32.gmra.mrb[0].mxu0 %v855
      %v938 = vpop.f32.mrb[0].mxu0
      %v939 = vadd.f32 %v841, %v938
      %v940 = vpop.f32.mrb[0].mxu0
      %v941 = vadd.f32 %v845, %v940
      %942 = vmatprep.mubr.f32.mxu0 0.0
      %943 = vmatmul.mubr.f32.gmra.mrb[0].mxu0 %v858
      %v944 = vpop.f32.mrb[0].mxu0
      %v945 = vadd.f32 %v841, %v944
      %v946 = vpop.f32.mrb[0].mxu0
      %v947 = vadd.f32 %v845, %v946
      %948 = vdwg.mxu0
      %949 = vst [vmem:[#allocation2] sm:$0xff] %v927
      %950 = vst.msk [vmem:[#allocation2 + $0x8] sm:$0xff] %vm754, %v929
      %951 = vst [vmem:[#allocation2 + $0x10] sm:$0xff] %v933
      %952 = vst.msk [vmem:[#allocation2 + $0x18] sm:$0xff] %vm754, %v935
      %953 = vst [vmem:[#allocation2 + $0x20] sm:$0xff] %v939
      %954 = vst.msk [vmem:[#allocation2 + $0x28] sm:$0xff] %vm754, %v941
      %955 = vst [vmem:[#allocation2 + $0x30] sm:$0xff] %v945
      %956 = vst.msk [vmem:[#allocation2 + $0x38] sm:$0xff] %vm754, %v947
      %v957 = vld [vmem:[%s7] sm:$0xff]
      %v958 = vld [vmem:[%s7 + $0x8] sm:$0xff]
      %v959 = vld [vmem:[%s7 + $0x10] sm:$0xff]
      %v960 = vld [vmem:[%s7 + $0x18] sm:$0xff]
      %v961 = vld [vmem:[%s7 + $0x20] sm:$0xff]
      %v962 = vld [vmem:[%s7 + $0x28] sm:$0xff]
      %v963 = vld [vmem:[%s7 + $0x30] sm:$0xff]
      %v964 = vld [vmem:[%s7 + $0x38] sm:$0xff]
      %v965 = vld [vmem:[%s7 + $0x40] sm:$0xff]
      %v966 = vld [vmem:[%s7 + $0x48] sm:$0xff]
      %v967 = vld [vmem:[%s7 + $0x50] sm:$0xff]
      %v968 = vld [vmem:[%s7 + $0x58] sm:$0xff]
      %v969 = vld [vmem:[%s7 + $0x60] sm:$0xff]
      %v970 = vld [vmem:[%s7 + $0x68] sm:$0xff]
      %v971 = vld [vmem:[%s7 + $0x70] sm:$0xff]
      %v972 = vld [vmem:[%s7 + $0x78] sm:$0xff]
      %v973 = vld [vmem:[%s8] sm:$0x1]
      %v974 = vld [vmem:[#allocation3] sm:$0xff]
      %s975 = smul.u32 0, 2
      %s976 = smul.addr %s975, 8
      %s977 = scalar_lea.vmem [#allocation2], %s976
      %v978 = vld [vmem:[%s977] sm:$0xff]
      %v979 = vld [vmem:[%s977 + $0x8] sm:$0xff]
      %v981 = vsel %vm754, %v974, 0
      %983 = vmatprep.subr.mxu0 %v958
      %984 = vmatpush1.msra.mxu0 %v957
      %985 = vmatprep.subr.mxu0 %v960
      %986 = vmatpush1.msra.mxu0 %v959
      %987 = vmatprep.subr.mxu0 %v962
      %988 = vmatpush1.msra.mxu0 %v961
      %989 = vmatprep.subr.mxu0 %v964
      %990 = vmatpush1.msra.mxu0 %v963
      %991 = vmatprep.subr.mxu0 %v966
      %992 = vmatpush1.msra.mxu0 %v965
      %993 = vmatprep.subr.mxu0 %v968
      %994 = vmatpush1.msra.mxu0 %v967
      %995 = vmatprep.subr.mxu0 %v970
      %996 = vmatpush1.msra.mxu0 %v969
      %997 = vmatprep.subr.mxu0 %v972
      %998 = vmatpush1.msra.mxu0 %v971
      %999 = vmatprep.subr.mxu0 0.0
      %1000 = vmatpush1.msra.mxu0 0.0
      %1001 = vmatprep.subr.mxu0 0.0
      %1002 = vmatpush1.msra.mxu0 0.0
      %1003 = vmatprep.subr.mxu0 0.0
      %1004 = vmatpush1.msra.mxu0 0.0
      %1005 = vmatprep.subr.mxu0 0.0
      %1006 = vmatpush1.msra.mxu0 0.0
      %1007 = vmatprep.subr.mxu0 0.0
      %1008 = vmatpush1.msra.mxu0 0.0
      %1009 = vmatprep.subr.mxu0 0.0
      %1010 = vmatpush1.msra.mxu0 0.0
      %1011 = vmatprep.subr.mxu0 0.0
      %1012 = vmatpush1.msra.mxu0 0.0
      %1013 = vmatprep.subr.mxu0 0.0
      %1014 = vmatpush1.msra.mxu0 0.0
      %1015 = vmatprep.subr.mxu0 0.0
      %1016 = vmatpush1.msra.mxu0 0.0
      %1017 = vmatprep.subr.mxu0 0.0
      %1018 = vmatpush1.msra.mxu0 0.0
      %1019 = vmatprep.subr.mxu0 0.0
      %1020 = vmatpush1.msra.mxu0 0.0
      %1021 = vmatprep.subr.mxu0 0.0
      %1022 = vmatpush1.msra.mxu0 0.0
      %1023 = vmatprep.subr.mxu0 0.0
      %1024 = vmatpush1.msra.mxu0 0.0
      %1025 = vmatprep.subr.mxu0 0.0
      %1026 = vmatpush1.msra.mxu0 0.0
      %1027 = vmatprep.subr.mxu0 0.0
      %1028 = vmatpush1.msra.mxu0 0.0
      %1029 = vmatprep.subr.mxu0 0.0
      %1030 = vmatpush1.msra.mxu0 0.0
      %1031 = vmatprep.subr.mxu0 0.0
      %1032 = vmatpush1.msra.mxu0 0.0
      %1033 = vmatprep.subr.mxu0 0.0
      %1034 = vmatpush1.msra.mxu0 0.0
      %1035 = vmatprep.subr.mxu0 0.0
      %1036 = vmatpush1.msra.mxu0 0.0
      %1037 = vmatprep.subr.mxu0 0.0
      %1038 = vmatpush1.msra.mxu0 0.0
      %1039 = vmatprep.subr.mxu0 0.0
      %1040 = vmatpush1.msra.mxu0 0.0
      %1041 = vmatprep.subr.mxu0 0.0
      %1042 = vmatpush1.msra.mxu0 0.0
      %1043 = vmatprep.subr.mxu0 0.0
      %1044 = vmatpush1.msra.mxu0 0.0
      %1045 = vmatprep.subr.mxu0 0.0
      %1046 = vmatpush1.msra.mxu0 0.0
      %1047 = vmatprep.mubr.f32.mxu0 0.0
      %1048 = vmatmul.mubr.f32.gmra.mrb[0].mxu0 %v981
      %v1049 = vpop.f32.mrb[0].mxu0
      %v1050 = vadd.f32 0.0, %v1049
      %v1051 = vpop.f32.mrb[0].mxu0
      %v1052 = vadd.f32 0.0, %v1051
      %1053 = vdwg.mxu0
      %v1054 = vadd.f32 %v978, %v1050
      %v1055 = vmul.f32 %v1054, 0.5
      %v1056 = vtanh.pop %v1055
      %v1057 = vadd.f32 %v1056, 1.0
      %v1058 = vmul.f32 %v1057, 0.5
      %v1060 = vlaneseq
      %v1061 = vshrl.u32 %v1060, 7
      %v1062 = vsub.s32 0, %v1061
      %v1063 = vrot.slane %v973, %v1062
      %v1065 = vadd.f32 %v1052, %v1063
      %v1066 = vmul.f32 %v1058, %v1065
      %v1067 = vadd.f32 %v979, %v1066
      %v1068 = vtanh.pop %v1067
      %v1069 = vsub.f32 %v974, %v1068
      %1071 = vrot.lane.b32.xlu0 %v1069, 64
      %v1072 = vpop.permute.xlu0 %1071
      %v1074 = vmul.f32 %v1058, %v1072
      %1076 = vrot.lane.b32.xlu0 %v1074, 64
      %v1077 = vpop.permute.xlu0 %1076
      %v1079 = vadd.f32 %v1068, %v1077
      %s1080 = smul.u32 1, 2
      %s1081 = smul.addr %s1080, 8
      %s1082 = scalar_lea.vmem [#allocation2], %s1081
      %v1083 = vld [vmem:[%s1082] sm:$0xff]
      %v1084 = vld [vmem:[%s1082 + $0x8] sm:$0xff]
      %v1086 = vsel %vm754, %v1079, 0
      %1088 = vmatprep.subr.mxu0 %v958
      %1089 = vmatpush1.msra.mxu0 %v957
      %1090 = vmatprep.subr.mxu0 %v960
      %1091 = vmatpush1.msra.mxu0 %v959
      %1092 = vmatprep.subr.mxu0 %v962
      %1093 = vmatpush1.msra.mxu0 %v961
      %1094 = vmatprep.subr.mxu0 %v964
      %1095 = vmatpush1.msra.mxu0 %v963
      %1096 = vmatprep.subr.mxu0 %v966
      %1097 = vmatpush1.msra.mxu0 %v965
      %1098 = vmatprep.subr.mxu0 %v968
      %1099 = vmatpush1.msra.mxu0 %v967
      %1100 = vmatprep.subr.mxu0 %v970
      %1101 = vmatpush1.msra.mxu0 %v969
      %1102 = vmatprep.subr.mxu0 %v972
      %1103 = vmatpush1.msra.mxu0 %v971
      %1104 = vmatprep.subr.mxu0 0.0
      %1105 = vmatpush1.msra.mxu0 0.0
      %1106 = vmatprep.subr.mxu0 0.0
      %1107 = vmatpush1.msra.mxu0 0.0
      %1108 = vmatprep.subr.mxu0 0.0
      %1109 = vmatpush1.msra.mxu0 0.0
      %1110 = vmatprep.subr.mxu0 0.0
      %1111 = vmatpush1.msra.mxu0 0.0
      %1112 = vmatprep.subr.mxu0 0.0
      %1113 = vmatpush1.msra.mxu0 0.0
      %1114 = vmatprep.subr.mxu0 0.0
      %1115 = vmatpush1.msra.mxu0 0.0
      %1116 = vmatprep.subr.mxu0 0.0
      %1117 = vmatpush1.msra.mxu0 0.0
      %1118 = vmatprep.subr.mxu0 0.0
      %1119 = vmatpush1.msra.mxu0 0.0
      %1120 = vmatprep.subr.mxu0 0.0
      %1121 = vmatpush1.msra.mxu0 0.0
      %1122 = vmatprep.subr.mxu0 0.0
      %1123 = vmatpush1.msra.mxu0 0.0
      %1124 = vmatprep.subr.mxu0 0.0
      %1125 = vmatpush1.msra.mxu0 0.0
      %1126 = vmatprep.subr.mxu0 0.0
      %1127 = vmatpush1.msra.mxu0 0.0
      %1128 = vmatprep.subr.mxu0 0.0
      %1129 = vmatpush1.msra.mxu0 0.0
      %1130 = vmatprep.subr.mxu0 0.0
      %1131 = vmatpush1.msra.mxu0 0.0
      %1132 = vmatprep.subr.mxu0 0.0
      %1133 = vmatpush1.msra.mxu0 0.0
      %1134 = vmatprep.subr.mxu0 0.0
      %1135 = vmatpush1.msra.mxu0 0.0
      %1136 = vmatprep.subr.mxu0 0.0
      %1137 = vmatpush1.msra.mxu0 0.0
      %1138 = vmatprep.subr.mxu0 0.0
      %1139 = vmatpush1.msra.mxu0 0.0
      %1140 = vmatprep.subr.mxu0 0.0
      %1141 = vmatpush1.msra.mxu0 0.0
      %1142 = vmatprep.subr.mxu0 0.0
      %1143 = vmatpush1.msra.mxu0 0.0
      %1144 = vmatprep.subr.mxu0 0.0
      %1145 = vmatpush1.msra.mxu0 0.0
      %1146 = vmatprep.subr.mxu0 0.0
      %1147 = vmatpush1.msra.mxu0 0.0
      %1148 = vmatprep.subr.mxu0 0.0
      %1149 = vmatpush1.msra.mxu0 0.0
      %1150 = vmatprep.subr.mxu0 0.0
      %1151 = vmatpush1.msra.mxu0 0.0
      %1152 = vmatprep.mubr.f32.mxu0 0.0
      %1153 = vmatmul.mubr.f32.gmra.mrb[0].mxu0 %v1086
      %v1154 = vpop.f32.mrb[0].mxu0
      %v1155 = vadd.f32 0.0, %v1154
      %v1156 = vpop.f32.mrb[0].mxu0
      %v1157 = vadd.f32 0.0, %v1156
      %1158 = vdwg.mxu0
      %v1159 = vadd.f32 %v1083, %v1155
      %v1160 = vmul.f32 %v1159, 0.5
      %v1161 = vtanh.pop %v1160
      %v1162 = vadd.f32 %v1161, 1.0
      %v1163 = vmul.f32 %v1162, 0.5
      %v1164 = vadd.f32 %v1157, %v1063
      %v1165 = vmul.f32 %v1163, %v1164
      %v1166 = vadd.f32 %v1084, %v1165
      %v1167 = vtanh.pop %v1166
      %v1168 = vsub.f32 %v1079, %v1167
      %1170 = vrot.lane.b32.xlu0 %v1168, 64
      %v1171 = vpop.permute.xlu0 %1170
      %v1173 = vmul.f32 %v1163, %v1171
      %1175 = vrot.lane.b32.xlu0 %v1173, 64
      %v1176 = vpop.permute.xlu0 %1175
      %v1178 = vadd.f32 %v1167, %v1176
      %s1179 = smul.u32 2, 2
      %s1180 = smul.addr %s1179, 8
      %s1181 = scalar_lea.vmem [#allocation2], %s1180
      %v1182 = vld [vmem:[%s1181] sm:$0xff]
      %v1183 = vld [vmem:[%s1181 + $0x8] sm:$0xff]
      %v1185 = vsel %vm754, %v1178, 0
      %1187 = vmatprep.subr.mxu0 %v958
      %1188 = vmatpush1.msra.mxu0 %v957
      %1189 = vmatprep.subr.mxu0 %v960
      %1190 = vmatpush1.msra.mxu0 %v959
      %1191 = vmatprep.subr.mxu0 %v962
      %1192 = vmatpush1.msra.mxu0 %v961
      %1193 = vmatprep.subr.mxu0 %v964
      %1194 = vmatpush1.msra.mxu0 %v963
      %1195 = vmatprep.subr.mxu0 %v966
      %1196 = vmatpush1.msra.mxu0 %v965
      %1197 = vmatprep.subr.mxu0 %v968
      %1198 = vmatpush1.msra.mxu0 %v967
      %1199 = vmatprep.subr.mxu0 %v970
      %1200 = vmatpush1.msra.mxu0 %v969
      %1201 = vmatprep.subr.mxu0 %v972
      %1202 = vmatpush1.msra.mxu0 %v971
      %1203 = vmatprep.subr.mxu0 0.0
      %1204 = vmatpush1.msra.mxu0 0.0
      %1205 = vmatprep.subr.mxu0 0.0
      %1206 = vmatpush1.msra.mxu0 0.0
      %1207 = vmatprep.subr.mxu0 0.0
      %1208 = vmatpush1.msra.mxu0 0.0
      %1209 = vmatprep.subr.mxu0 0.0
      %1210 = vmatpush1.msra.mxu0 0.0
      %1211 = vmatprep.subr.mxu0 0.0
      %1212 = vmatpush1.msra.mxu0 0.0
      %1213 = vmatprep.subr.mxu0 0.0
      %1214 = vmatpush1.msra.mxu0 0.0
      %1215 = vmatprep.subr.mxu0 0.0
      %1216 = vmatpush1.msra.mxu0 0.0
      %1217 = vmatprep.subr.mxu0 0.0
      %1218 = vmatpush1.msra.mxu0 0.0
      %1219 = vmatprep.subr.mxu0 0.0
      %1220 = vmatpush1.msra.mxu0 0.0
      %1221 = vmatprep.subr.mxu0 0.0
      %1222 = vmatpush1.msra.mxu0 0.0
      %1223 = vmatprep.subr.mxu0 0.0
      %1224 = vmatpush1.msra.mxu0 0.0
      %1225 = vmatprep.subr.mxu0 0.0
      %1226 = vmatpush1.msra.mxu0 0.0
      %1227 = vmatprep.subr.mxu0 0.0
      %1228 = vmatpush1.msra.mxu0 0.0
      %1229 = vmatprep.subr.mxu0 0.0
      %1230 = vmatpush1.msra.mxu0 0.0
      %1231 = vmatprep.subr.mxu0 0.0
      %1232 = vmatpush1.msra.mxu0 0.0
      %1233 = vmatprep.subr.mxu0 0.0
      %1234 = vmatpush1.msra.mxu0 0.0
      %1235 = vmatprep.subr.mxu0 0.0
      %1236 = vmatpush1.msra.mxu0 0.0
      %1237 = vmatprep.subr.mxu0 0.0
      %1238 = vmatpush1.msra.mxu0 0.0
      %1239 = vmatprep.subr.mxu0 0.0
      %1240 = vmatpush1.msra.mxu0 0.0
      %1241 = vmatprep.subr.mxu0 0.0
      %1242 = vmatpush1.msra.mxu0 0.0
      %1243 = vmatprep.subr.mxu0 0.0
      %1244 = vmatpush1.msra.mxu0 0.0
      %1245 = vmatprep.subr.mxu0 0.0
      %1246 = vmatpush1.msra.mxu0 0.0
      %1247 = vmatprep.subr.mxu0 0.0
      %1248 = vmatpush1.msra.mxu0 0.0
      %1249 = vmatprep.subr.mxu0 0.0
      %1250 = vmatpush1.msra.mxu0 0.0
      %1251 = vmatprep.mubr.f32.mxu0 0.0
      %1252 = vmatmul.mubr.f32.gmra.mrb[0].mxu0 %v1185
      %v1253 = vpop.f32.mrb[0].mxu0
      %v1254 = vadd.f32 0.0, %v1253
      %v1255 = vpop.f32.mrb[0].mxu0
      %v1256 = vadd.f32 0.0, %v1255
      %1257 = vdwg.mxu0
      %v1258 = vadd.f32 %v1182, %v1254
      %v1259 = vmul.f32 %v1258, 0.5
      %v1260 = vtanh.pop %v1259
      %v1261 = vadd.f32 %v1260, 1.0
      %v1262 = vmul.f32 %v1261, 0.5
      %v1263 = vadd.f32 %v1256, %v1063
      %v1264 = vmul.f32 %v1262, %v1263
      %v1265 = vadd.f32 %v1183, %v1264
      %v1266 = vtanh.pop %v1265
      %v1267 = vsub.f32 %v1178, %v1266
      %1269 = vrot.lane.b32.xlu0 %v1267, 64
      %v1270 = vpop.permute.xlu0 %1269
      %v1272 = vmul.f32 %v1262, %v1270
      %1274 = vrot.lane.b32.xlu0 %v1272, 64
      %v1275 = vpop.permute.xlu0 %1274
      %v1277 = vadd.f32 %v1266, %v1275
      %s1278 = smul.u32 3, 2
      %s1279 = smul.addr %s1278, 8
      %s1280 = scalar_lea.vmem [#allocation2], %s1279
      %v1281 = vld [vmem:[%s1280] sm:$0xff]
      %v1282 = vld [vmem:[%s1280 + $0x8] sm:$0xff]
      %v1284 = vsel %vm754, %v1277, 0
      %1286 = vmatprep.subr.mxu0 %v958
      %1287 = vmatpush1.msra.mxu0 %v957
      %1288 = vmatprep.subr.mxu0 %v960
      %1289 = vmatpush1.msra.mxu0 %v959
      %1290 = vmatprep.subr.mxu0 %v962
      %1291 = vmatpush1.msra.mxu0 %v961
      %1292 = vmatprep.subr.mxu0 %v964
      %1293 = vmatpush1.msra.mxu0 %v963
      %1294 = vmatprep.subr.mxu0 %v966
      %1295 = vmatpush1.msra.mxu0 %v965
      %1296 = vmatprep.subr.mxu0 %v968
      %1297 = vmatpush1.msra.mxu0 %v967
      %1298 = vmatprep.subr.mxu0 %v970
      %1299 = vmatpush1.msra.mxu0 %v969
      %1300 = vmatprep.subr.mxu0 %v972
      %1301 = vmatpush1.msra.mxu0 %v971
      %1302 = vmatprep.subr.mxu0 0.0
      %1303 = vmatpush1.msra.mxu0 0.0
      %1304 = vmatprep.subr.mxu0 0.0
      %1305 = vmatpush1.msra.mxu0 0.0
      %1306 = vmatprep.subr.mxu0 0.0
      %1307 = vmatpush1.msra.mxu0 0.0
      %1308 = vmatprep.subr.mxu0 0.0
      %1309 = vmatpush1.msra.mxu0 0.0
      %1310 = vmatprep.subr.mxu0 0.0
      %1311 = vmatpush1.msra.mxu0 0.0
      %1312 = vmatprep.subr.mxu0 0.0
      %1313 = vmatpush1.msra.mxu0 0.0
      %1314 = vmatprep.subr.mxu0 0.0
      %1315 = vmatpush1.msra.mxu0 0.0
      %1316 = vmatprep.subr.mxu0 0.0
      %1317 = vmatpush1.msra.mxu0 0.0
      %1318 = vmatprep.subr.mxu0 0.0
      %1319 = vmatpush1.msra.mxu0 0.0
      %1320 = vmatprep.subr.mxu0 0.0
      %1321 = vmatpush1.msra.mxu0 0.0
      %1322 = vmatprep.subr.mxu0 0.0
      %1323 = vmatpush1.msra.mxu0 0.0
      %1324 = vmatprep.subr.mxu0 0.0
      %1325 = vmatpush1.msra.mxu0 0.0
      %1326 = vmatprep.subr.mxu0 0.0
      %1327 = vmatpush1.msra.mxu0 0.0
      %1328 = vmatprep.subr.mxu0 0.0
      %1329 = vmatpush1.msra.mxu0 0.0
      %1330 = vmatprep.subr.mxu0 0.0
      %1331 = vmatpush1.msra.mxu0 0.0
      %1332 = vmatprep.subr.mxu0 0.0
      %1333 = vmatpush1.msra.mxu0 0.0
      %1334 = vmatprep.subr.mxu0 0.0
      %1335 = vmatpush1.msra.mxu0 0.0
      %1336 = vmatprep.subr.mxu0 0.0
      %1337 = vmatpush1.msra.mxu0 0.0
      %1338 = vmatprep.subr.mxu0 0.0
      %1339 = vmatpush1.msra.mxu0 0.0
      %1340 = vmatprep.subr.mxu0 0.0
      %1341 = vmatpush1.msra.mxu0 0.0
      %1342 = vmatprep.subr.mxu0 0.0
      %1343 = vmatpush1.msra.mxu0 0.0
      %1344 = vmatprep.subr.mxu0 0.0
      %1345 = vmatpush1.msra.mxu0 0.0
      %1346 = vmatprep.subr.mxu0 0.0
      %1347 = vmatpush1.msra.mxu0 0.0
      %1348 = vmatprep.subr.mxu0 0.0
      %1349 = vmatpush1.msra.mxu0 0.0
      %1350 = vmatprep.mubr.f32.mxu0 0.0
      %1351 = vmatmul.mubr.f32.gmra.mrb[0].mxu0 %v1284
      %v1352 = vpop.f32.mrb[0].mxu0
      %v1353 = vadd.f32 0.0, %v1352
      %v1354 = vpop.f32.mrb[0].mxu0
      %v1355 = vadd.f32 0.0, %v1354
      %1356 = vdwg.mxu0
      %v1357 = vadd.f32 %v1281, %v1353
      %v1358 = vmul.f32 %v1357, 0.5
      %v1359 = vtanh.pop %v1358
      %v1360 = vadd.f32 %v1359, 1.0
      %v1361 = vmul.f32 %v1360, 0.5
      %v1362 = vadd.f32 %v1355, %v1063
      %v1363 = vmul.f32 %v1361, %v1362
      %v1364 = vadd.f32 %v1282, %v1363
      %v1365 = vtanh.pop %v1364
      %v1366 = vsub.f32 %v1277, %v1365
      %1368 = vrot.lane.b32.xlu0 %v1366, 64
      %v1369 = vpop.permute.xlu0 %1368
      %v1371 = vmul.f32 %v1361, %v1369
      %1373 = vrot.lane.b32.xlu0 %v1371, 64
      %v1374 = vpop.permute.xlu0 %1373
      %v1376 = vadd.f32 %v1365, %v1374
      %1377 = vst.msk [vmem:[#allocation3] sm:$0xff] %vm754, %v1376
      %p1378 = scmp.eq.s32.totalorder %s29, 1
      // Predicated region
      $region77: #{gru_classifier_forward.1} parent=71 // pred_check
        %p1379 = pneg %p1378
      $region78: #{gru_classifier_forward.1} parent=71 // pred_check_branch
        %1381 = sbr.rel (%p1379) target = $region80
      $region79: #{gru_classifier_forward.1} parent=71 // pred_region
        %v1382 = vld [vmem:[%s9] sm:$0xff]
        %v1383 = vld [vmem:[%s9 + $0x8] sm:$0xff]
        %v1384 = vld [vmem:[%s9 + $0x10] sm:$0xff]
        %v1385 = vld [vmem:[%s9 + $0x18] sm:$0xff]
        %v1386 = vld [vmem:[%s9 + $0x20] sm:$0xff]
        %v1387 = vld [vmem:[%s9 + $0x28] sm:$0xff]
        %v1388 = vld [vmem:[%s9 + $0x30] sm:$0xff]
        %v1389 = vld [vmem:[%s9 + $0x38] sm:$0xff]
        %v1390 = vld [vmem:[%s10] sm:$0x1]
        %v1392 = vlaneseq
        %v1393 = vshrl.u32 %v1392, 7
        %v1394 = vsub.s32 0, %v1393
        %v1395 = vrot.slane %v1390, %v1394
        %v1398 = vsel %vm754, %v1376, 0
        %1400 = vmatprep.subr.mxu0 0.0
        %1401 = vmatpush1.msra.mxu0 %v1382
        %1402 = vmatprep.subr.mxu0 0.0
        %1403 = vmatpush1.msra.mxu0 %v1383
        %1404 = vmatprep.subr.mxu0 0.0
        %1405 = vmatpush1.msra.mxu0 %v1384
        %1406 = vmatprep.subr.mxu0 0.0
        %1407 = vmatpush1.msra.mxu0 %v1385
        %1408 = vmatprep.subr.mxu0 0.0
        %1409 = vmatpush1.msra.mxu0 %v1386
        %1410 = vmatprep.subr.mxu0 0.0
        %1411 = vmatpush1.msra.mxu0 %v1387
        %1412 = vmatprep.subr.mxu0 0.0
        %1413 = vmatpush1.msra.mxu0 %v1388
        %1414 = vmatprep.subr.mxu0 0.0
        %1415 = vmatpush1.msra.mxu0 %v1389
        %1416 = vmatprep.subr.mxu0 0.0
        %1417 = vmatpush1.msra.mxu0 0.0
        %1418 = vmatprep.subr.mxu0 0.0
        %1419 = vmatpush1.msra.mxu0 0.0
        %1420 = vmatprep.subr.mxu0 0.0
        %1421 = vmatpush1.msra.mxu0 0.0
        %1422 = vmatprep.subr.mxu0 0.0
        %1423 = vmatpush1.msra.mxu0 0.0
        %1424 = vmatprep.subr.mxu0 0.0
        %1425 = vmatpush1.msra.mxu0 0.0
        %1426 = vmatprep.subr.mxu0 0.0
        %1427 = vmatpush1.msra.mxu0 0.0
        %1428 = vmatprep.subr.mxu0 0.0
        %1429 = vmatpush1.msra.mxu0 0.0
        %1430 = vmatprep.subr.mxu0 0.0
        %1431 = vmatpush1.msra.mxu0 0.0
        %1432 = vmatprep.subr.mxu0 0.0
        %1433 = vmatpush1.msra.mxu0 0.0
        %1434 = vmatprep.subr.mxu0 0.0
        %1435 = vmatpush1.msra.mxu0 0.0
        %1436 = vmatprep.subr.mxu0 0.0
        %1437 = vmatpush1.msra.mxu0 0.0
        %1438 = vmatprep.subr.mxu0 0.0
        %1439 = vmatpush1.msra.mxu0 0.0
        %1440 = vmatprep.subr.mxu0 0.0
        %1441 = vmatpush1.msra.mxu0 0.0
        %1442 = vmatprep.subr.mxu0 0.0
        %1443 = vmatpush1.msra.mxu0 0.0
        %1444 = vmatprep.subr.mxu0 0.0
        %1445 = vmatpush1.msra.mxu0 0.0
        %1446 = vmatprep.subr.mxu0 0.0
        %1447 = vmatpush1.msra.mxu0 0.0
        %1448 = vmatprep.subr.mxu0 0.0
        %1449 = vmatpush1.msra.mxu0 0.0
        %1450 = vmatprep.subr.mxu0 0.0
        %1451 = vmatpush1.msra.mxu0 0.0
        %1452 = vmatprep.subr.mxu0 0.0
        %1453 = vmatpush1.msra.mxu0 0.0
        %1454 = vmatprep.subr.mxu0 0.0
        %1455 = vmatpush1.msra.mxu0 0.0
        %1456 = vmatprep.subr.mxu0 0.0
        %1457 = vmatpush1.msra.mxu0 0.0
        %1458 = vmatprep.subr.mxu0 0.0
        %1459 = vmatpush1.msra.mxu0 0.0
        %1460 = vmatprep.subr.mxu0 0.0
        %1461 = vmatpush1.msra.mxu0 0.0
        %1462 = vmatprep.subr.mxu0 0.0
        %1463 = vmatpush1.msra.mxu0 0.0
        %1464 = vmatprep.mubr.f32.mxu0 0.0
        %1465 = vmatmul.mubr.f32.gmra.mrb[0].mxu0 %v1398
        %v1466 = vpop.f32.mrb[0].mxu0
        %v1467 = vadd.f32 %v1395, %v1466
        %v1468 = vpop.f32.mrb[0].mxu0
        %1469 = vdwg.mxu0
        %v1470 = vmax.f32 %v1467, 0.0
        %vm1471 = vcmask 261120
        %v1472 = vsel %vm1471, %v1470, 0.0
        %1473 = vadd.xlane.f32.xlu0 %v1472
        %v1474 = vpop.xlane.xlu0 %1473
        %v1475 = vrcp.pop 32.0
        %v1476 = vmul.f32 %v1474, %v1475
        %v1477 = vmul.f32 %v1470, %v1470
        %v1478 = vsel %vm1471, %v1477, 0.0
        %1479 = vadd.xlane.f32.xlu0 %v1478
        %v1480 = vpop.xlane.xlu0 %1479
        %v1481 = vmul.f32 %v1480, %v1475
        %v1482 = vmul.f32 %v1476, %v1476
        %v1483 = vsub.f32 %v1481, %v1482
        %v1484 = vmax.f32 %v1483, 0.0
        %v1485 = vsub.f32 %v1470, %v1476
        %v1486 = vadd.f32 %v1484, 1e-05
        %v1487 = vrsqrt.pop %v1486
        %v1488 = vmul.f32 %v1485, %v1487
        %1490 = vrot.lane.b32.xlu0 %v1470, 96
        %v1491 = vpop.permute.xlu0 %1490
        %v1493 = vsel %vm1471, %v1491, 0.0
        %1494 = vadd.xlane.f32.xlu0 %v1493
        %v1495 = vpop.xlane.xlu0 %1494
        %v1496 = vmul.f32 %v1495, %v1475
        %1498 = vrot.lane.b32.xlu0 %v1477, 96
        %v1499 = vpop.permute.xlu0 %1498
        %v1501 = vsel %vm1471, %v1499, 0.0
        %1502 = vadd.xlane.f32.xlu0 %v1501
        %v1503 = vpop.xlane.xlu0 %1502
        %v1504 = vmul.f32 %v1503, %v1475
        %v1505 = vmul.f32 %v1496, %v1496
        %v1506 = vsub.f32 %v1504, %v1505
        %v1507 = vmax.f32 %v1506, 0.0
        %v1508 = vsub.f32 %v1470, %v1496
        %v1509 = vadd.f32 %v1507, 1e-05
        %v1510 = vrsqrt.pop %v1509
        %v1511 = vmul.f32 %v1508, %v1510
        %v1512 = vsel %vm1471, %v1488, %v1511
        %v1513 = vld [vmem:[%s11] sm:$0xff]
        %v1514 = vld [vmem:[%s11 + $0x8] sm:$0xff]
        %v1515 = vld [vmem:[%s11 + $0x10] sm:$0xff]
        %v1516 = vld [vmem:[%s11 + $0x18] sm:$0xff]
        %v1517 = vld [vmem:[%s11 + $0x20] sm:$0xff]
        %v1518 = vld [vmem:[%s11 + $0x28] sm:$0xff]
        %v1519 = vld [vmem:[%s11 + $0x30] sm:$0xff]
        %v1520 = vld [vmem:[%s11 + $0x38] sm:$0xff]
        %v1521 = vld [vmem:[%s12] sm:$0x1]
        %v1523 = vlaneseq
        %v1524 = vshrl.u32 %v1523, 7
        %v1525 = vsub.s32 0, %v1524
        %v1526 = vrot.slane %v1521, %v1525
        %v1529 = vsel %vm754, %v1512, 0
        %1531 = vmatprep.subr.mxu0 0.0
        %1532 = vmatpush1.msra.mxu0 %v1513
        %1533 = vmatprep.subr.mxu0 0.0
        %1534 = vmatpush1.msra.mxu0 %v1514
        %1535 = vmatprep.subr.mxu0 0.0
        %1536 = vmatpush1.msra.mxu0 %v1515
        %1537 = vmatprep.subr.mxu0 0.0
        %1538 = vmatpush1.msra.mxu0 %v1516
        %1539 = vmatprep.subr.mxu0 0.0
        %1540 = vmatpush1.msra.mxu0 %v1517
        %1541 = vmatprep.subr.mxu0 0.0
        %1542 = vmatpush1.msra.mxu0 %v1518
        %1543 = vmatprep.subr.mxu0 0.0
        %1544 = vmatpush1.msra.mxu0 %v1519
        %1545 = vmatprep.subr.mxu0 0.0
        %1546 = vmatpush1.msra.mxu0 %v1520
        %1547 = vmatprep.subr.mxu0 0.0
        %1548 = vmatpush1.msra.mxu0 0.0
        %1549 = vmatprep.subr.mxu0 0.0
        %1550 = vmatpush1.msra.mxu0 0.0
        %1551 = vmatprep.subr.mxu0 0.0
        %1552 = vmatpush1.msra.mxu0 0.0
        %1553 = vmatprep.subr.mxu0 0.0
        %1554 = vmatpush1.msra.mxu0 0.0
        %1555 = vmatprep.subr.mxu0 0.0
        %1556 = vmatpush1.msra.mxu0 0.0
        %1557 = vmatprep.subr.mxu0 0.0
        %1558 = vmatpush1.msra.mxu0 0.0
        %1559 = vmatprep.subr.mxu0 0.0
        %1560 = vmatpush1.msra.mxu0 0.0
        %1561 = vmatprep.subr.mxu0 0.0
        %1562 = vmatpush1.msra.mxu0 0.0
        %1563 = vmatprep.subr.mxu0 0.0
        %1564 = vmatpush1.msra.mxu0 0.0
        %1565 = vmatprep.subr.mxu0 0.0
        %1566 = vmatpush1.msra.mxu0 0.0
        %1567 = vmatprep.subr.mxu0 0.0
        %1568 = vmatpush1.msra.mxu0 0.0
        %1569 = vmatprep.subr.mxu0 0.0
        %1570 = vmatpush1.msra.mxu0 0.0
        %1571 = vmatprep.subr.mxu0 0.0
        %1572 = vmatpush1.msra.mxu0 0.0
        %1573 = vmatprep.subr.mxu0 0.0
        %1574 = vmatpush1.msra.mxu0 0.0
        %1575 = vmatprep.subr.mxu0 0.0
        %1576 = vmatpush1.msra.mxu0 0.0
        %1577 = vmatprep.subr.mxu0 0.0
        %1578 = vmatpush1.msra.mxu0 0.0
        %1579 = vmatprep.subr.mxu0 0.0
        %1580 = vmatpush1.msra.mxu0 0.0
        %1581 = vmatprep.subr.mxu0 0.0
        %1582 = vmatpush1.msra.mxu0 0.0
        %1583 = vmatprep.subr.mxu0 0.0
        %1584 = vmatpush1.msra.mxu0 0.0
        %1585 = vmatprep.subr.mxu0 0.0
        %1586 = vmatpush1.msra.mxu0 0.0
        %1587 = vmatprep.subr.mxu0 0.0
        %1588 = vmatpush1.msra.mxu0 0.0
        %1589 = vmatprep.subr.mxu0 0.0
        %1590 = vmatpush1.msra.mxu0 0.0
        %1591 = vmatprep.subr.mxu0 0.0
        %1592 = vmatpush1.msra.mxu0 0.0
        %1593 = vmatprep.subr.mxu0 0.0
        %1594 = vmatpush1.msra.mxu0 0.0
        %1595 = vmatprep.mubr.f32.mxu0 0.0
        %1596 = vmatmul.mubr.f32.gmra.mrb[0].mxu0 %v1529
        %v1597 = vpop.f32.mrb[0].mxu0
        %v1598 = vadd.f32 %v1526, %v1597
        %v1599 = vpop.f32.mrb[0].mxu0
        %1600 = vdwg.mxu0
        %vm1601 = vcmask 64512
        %1602 = vst.msk [vmem:[%s463] sm:$0xff] %vm1601, %v1598
      $region80: #{gru_classifier_forward.1} parent=71 // pred_fallthru
        _
      %p1603 = scmp.lt.s32.totalorder %s28, 0
      %s1604 = scalar_select %p1603, %s28, 0
      %s1605 = smul.addr %s1604, 8
      %s1606 = scalar_lea.vmem %s13, %s1605
      // Predicated region
      $region81: #{gru_classifier_forward.1} parent=71 // pred_check
        %p1607 = pneg %p334
      $region82: #{gru_classifier_forward.1} parent=71 // pred_check_branch
        %1609 = sbr.rel (%p1607) target = $region84
      $region83: #{gru_classifier_forward.1} parent=71 // pred_region
        _
      $region84: #{gru_classifier_forward.1} parent=71 // pred_fallthru
        _
      // Predicated region
      $region85: #{gru_classifier_forward.1} parent=71 // pred_check
        %p1610 = pneg %p334
      $region86: #{gru_classifier_forward.1} parent=71 // pred_check_branch
        %1612 = sbr.rel (%p1610) target = $region88
      $region87: #{gru_classifier_forward.1} parent=71 // pred_region
        %p1613 = scmp.lt.s32.totalorder %s28, 0
        %s1614 = scalar_select %p1613, %s28, 0
        %s1615 = smul.addr %s1614, 8
        %s1616 = scalar_lea.vmem %s13, %s1615
      $region88: #{gru_classifier_forward.1} parent=71 // pred_fallthru
        _
    $region72: #{gru_classifier_forward.1} parent=5 // pred_fallthru
      _
    %p1617 = scmp.le.s32.totalorder 2, %s19
    // Predicated region
    $region89: #{gru_classifier_forward.1} parent=5 // pred_check
      %p1618 = pneg %p1617
    $region90: #{gru_classifier_forward.1} parent=5 // pred_check_branch
      %1620 = sbr.rel (%p1618) target = $region92
    $region91: #{gru_classifier_forward.1} parent=5 // pred_region
      %s1621 = ssub.s32 %s19, 2
    $region92: #{gru_classifier_forward.1} parent=5 // pred_fallthru
      _
  $region6: #{gru_classifier_forward.1} parent=0 // loop_footer
    %s23 = sadd.s32 1, %s19
  $region7: #{gru_classifier_forward.1} parent=0 // loop_footer_branch
    %18 = sbr.rel target = $region3
  $region8: #{gru_classifier_forward.1} parent=0 // loop_exit
    _

</llo_original>
